<compile_context>
chip_gen: v7x
topology: tpu7x:2x2x1
jax: 0.10.0
libtpu: 0.0.40
codegen_flags: <defaults>
</compile_context>

<pallas_src>
import functools

import jax
import jax.numpy as jnp
from jax import lax
from jax.experimental import pallas as pl
from jax.experimental.pallas import tpu as pltpu


# ---------------------------------------------------------------------------
# In-kernel helpers (traced inside the Pallas body)
# ---------------------------------------------------------------------------
def _layernorm(x, gamma, beta, eps=1e-5):
    # PyTorch nn.LayerNorm: biased variance, eps inside sqrt.
    mu = jnp.mean(x, axis=-1, keepdims=True)
    var = jnp.mean((x - mu) ** 2, axis=-1, keepdims=True)
    return (x - mu) * lax.rsqrt(var + eps) * gamma + beta


def _gelu_exact(x):
    # PyTorch nn.GELU() default = exact erf formulation.
    return 0.5 * x * (1.0 + lax.erf(x * 0.7071067811865476))


# ---------------------------------------------------------------------------
# Pallas kernel: one full transformer block for the whole (flattened) batch
# ---------------------------------------------------------------------------
def transformer_block_kernel(
    x_ref,
    ln1g_ref, ln1b_ref,
    wqkv_ref, bqkv_ref,
    wo_ref, bo_ref,
    ln2g_ref, ln2b_ref,
    w1_ref, b1_ref, w2_ref, b2_ref,
    out_ref,
    *, batch, num_heads,
):
    x = x_ref[...].astype(jnp.float32)          # (B*S, E)
    BS, E = x.shape
    B = batch
    S = BS // B
    H = num_heads
    D = E // H
    scale = 1.0 / (D ** 0.5)

    # ---- sub-block 1: X + Attn(LN1(X)) ---------------------------------
    xn = _layernorm(x, ln1g_ref[...], ln1b_ref[...])

    # Fused QKV projection: one (B*S, E) @ (E, 3E) matmul.
    qkv = jnp.dot(xn, wqkv_ref[...], preferred_element_type=jnp.float32) \
        + bqkv_ref[...]
    q = qkv[:, 0 * E:1 * E] * scale             # fold 1/sqrt(D) into Q
    k = qkv[:, 1 * E:2 * E]
    v = qkv[:, 2 * E:3 * E]

    # Gather heads into a single leading batch dim g = B*H (lane-slice +
    # stack; avoids a lane-splitting reshape the compiler may relayout).
    def heads_of(t):
        return jnp.stack(
            [t[b * S:(b + 1) * S, h * D:(h + 1) * D]
             for b in range(B) for h in range(H)], axis=0)   # (B*H, S, D)

    qh = heads_of(q)
    kh = heads_of(k)
    vh = heads_of(v)

    # Batched attention: two batched contractions instead of 4*B tiny dots.
    s = jnp.einsum("gqd,gkd->gqk", qh, kh,
                   preferred_element_type=jnp.float32)       # (B*H, S, S)
    s = s - jnp.max(s, axis=-1, keepdims=True)
    p = jnp.exp(s)
    p = p * pl.reciprocal(jnp.sum(p, axis=-1, keepdims=True), approx=True)
    o = jnp.einsum("gqk,gkd->gqd", p, vh,
                   preferred_element_type=jnp.float32)       # (B*H, S, D)

    # Re-assemble per-head context in registers (no VMEM scratch round-trip):
    # concat heads along lanes -> (S, E), then batches along rows -> (B*S, E).
    ctx = jnp.concatenate(
        [jnp.concatenate([o[b * H + h] for h in range(H)], axis=1)
         for b in range(B)], axis=0)                          # (B*S, E)

    attn = jnp.dot(ctx, wo_ref[...],
                   preferred_element_type=jnp.float32) + bo_ref[...]
    x1 = x + attn

    # ---- sub-block 2: X + MLP(LN2(X)) ----------------------------------
    xn2 = _layernorm(x1, ln2g_ref[...], ln2b_ref[...])
    h1 = jnp.dot(xn2, w1_ref[...], preferred_element_type=jnp.float32) \
        + b1_ref[...]
    h1 = _gelu_exact(h1)
    h2 = jnp.dot(h1, w2_ref[...], preferred_element_type=jnp.float32) \
        + b2_ref[...]

    out_ref[...] = (x1 + h2).astype(out_ref.dtype)


# ---------------------------------------------------------------------------
# Wrapper
# ---------------------------------------------------------------------------
def transformer_block(x, params, num_heads):
    B, S, E = x.shape
    Hm = params["w1"].shape[1]          # mlp hidden size

    # Pack QKV weights/biases once in the wrapper (free, done by XLA).
    wqkv = jnp.concatenate([params["wq"], params["wk"], params["wv"]], axis=1)
    bqkv = jnp.concatenate([params["bq"], params["bk"], params["bv"]], axis=1)

    x2d = x.reshape(B * S, E)

    def full(shape):
        # whole (small) array resident in VMEM for the single grid step
        return pl.BlockSpec(shape, lambda i: tuple(0 for _ in shape))

    kernel = functools.partial(transformer_block_kernel,
                               batch=B, num_heads=num_heads)

    out2d = pl.pallas_call(
        kernel,
        out_shape=jax.ShapeDtypeStruct((B * S, E), x.dtype),
        grid=(1,),
        in_specs=[
            full((B * S, E)),                       # x (flattened)
            full((1, E)), full((1, E)),             # ln1 gamma / beta
            full((E, 3 * E)), full((1, 3 * E)),     # fused Wqkv, bqkv
            full((E, E)), full((1, E)),             # Wo, bo
            full((1, E)), full((1, E)),             # ln2 gamma / beta
            full((E, Hm)), full((1, Hm)),           # W1, b1
            full((Hm, E)), full((1, E)),            # W2, b2
        ],
        out_specs=full((B * S, E)),
        compiler_params=pltpu.CompilerParams(
            dimension_semantics=("arbitrary",)),
    )(
        x2d,
        params["ln1_g"], params["ln1_b"],
        wqkv, bqkv,
        params["wo"], params["bo"],
        params["ln2_g"], params["ln2_b"],
        params["w1"], params["b1"], params["w2"], params["b2"],
    )
    return out2d.reshape(B, S, E)


# ---------------------------------------------------------------------------
# Pure-JAX reference (mirrors the PyTorch forward exactly)
# ---------------------------------------------------------------------------
def reference_block(x, params, num_heads):
    B, S, E = x.shape
    D = E // num_heads

    def ln(v, g, b):
        mu = jnp.mean(v, axis=-1, keepdims=True)
        var = jnp.mean((v - mu) ** 2, axis=-1, keepdims=True)
        return (v - mu) / jnp.sqrt(var + 1e-5) * g + b

    xn = ln(x, params["ln1_g"], params["ln1_b"])
    q = xn @ params["wq"] + params["bq"]
    k = xn @ params["wk"] + params["bk"]
    v = xn @ params["wv"] + params["bv"]
    q = q.reshape(B, S, num_heads, D).transpose(0, 2, 1, 3)
    k = k.reshape(B, S, num_heads, D).transpose(0, 2, 1, 3)
    v = v.reshape(B, S, num_heads, D).transpose(0, 2, 1, 3)
    energy = jnp.einsum("bhqd,bhkd->bhqk", q, k) / (D ** 0.5)
    attn = jax.nn.softmax(energy, axis=-1)
    out = jnp.einsum("bhqk,bhkd->bhqd", attn, v)
    out = out.transpose(0, 2, 1, 3).reshape(B, S, E)
    out = out @ params["wo"] + params["bo"]
    x1 = x + out

    xn2 = ln(x1, params["ln2_g"], params["ln2_b"])
    h = xn2 @ params["w1"] + params["b1"]
    h = 0.5 * h * (1.0 + lax.erf(h / jnp.sqrt(2.0)))
    h = h @ params["w2"] + params["b2"]
    return x1 + h


# ---------------------------------------------------------------------------
def make_params(key, E, H):
    ks = jax.random.split(key, 8)
    std = 0.02
    return {
        "ln1_g": jnp.ones((1, E), jnp.float32),
        "ln1_b": jnp.zeros((1, E), jnp.float32),
        "wq": std * jax.random.normal(ks[0], (E, E), jnp.float32),
        "bq": jnp.zeros((1, E), jnp.float32),
        "wk": std * jax.random.normal(ks[1], (E, E), jnp.float32),
        "bk": jnp.zeros((1, E), jnp.float32),
        "wv": std * jax.random.normal(ks[2], (E, E), jnp.float32),
        "bv": jnp.zeros((1, E), jnp.float32),
        "wo": std * jax.random.normal(ks[3], (E, E), jnp.float32),
        "bo": jnp.zeros((1, E), jnp.float32),
        "ln2_g": jnp.ones((1, E), jnp.float32),
        "ln2_b": jnp.zeros((1, E), jnp.float32),
        "w1": std * jax.random.normal(ks[4], (E, H), jnp.float32),
        "b1": 0.01 * jnp.ones((1, H), jnp.float32),
        "w2": std * jax.random.normal(ks[5], (H, E), jnp.float32),
        "b2": 0.01 * jnp.ones((1, E), jnp.float32),
    }


if __name__ == "__main__":
    B, S, E = 2, 8, 32          # batch, num_patches+1+num_registers, embedding
    num_heads = 4
    mlp_ratio = 4
    Hm = mlp_ratio * E

    key = jax.random.PRNGKey(0)
    kx, kp = jax.random.split(key)
    x = jax.random.normal(kx, (B, S, E), jnp.float32)
    params = make_params(kp, E, Hm)

    out = transformer_block(x, params, num_heads)
    out = jax.block_until_ready(out)

    ref = reference_block(x, params, num_heads)
    assert out.shape == (B, S, E)
    # slightly loose to allow for the approx-reciprocal softmax (EUP vrcp)
    assert jnp.allclose(out, ref, atol=2e-4, rtol=2e-4), "mismatch vs reference"
    print("KERNEL_OK")
</pallas_src>

<mosaic_0001>
module attributes {stable_mosaic.version = 11 : i64} {
  func.func @transformer_block_kernel(%arg0: i32, %arg1: memref<16x32xf32, #tpu.memory_space<vmem>>, %arg2: memref<1x32xf32, #tpu.memory_space<vmem>>, %arg3: memref<1x32xf32, #tpu.memory_space<vmem>>, %arg4: memref<32x96xf32, #tpu.memory_space<vmem>>, %arg5: memref<1x96xf32, #tpu.memory_space<vmem>>, %arg6: memref<32x32xf32, #tpu.memory_space<vmem>>, %arg7: memref<1x32xf32, #tpu.memory_space<vmem>>, %arg8: memref<1x32xf32, #tpu.memory_space<vmem>>, %arg9: memref<1x32xf32, #tpu.memory_space<vmem>>, %arg10: memref<32x128xf32, #tpu.memory_space<vmem>>, %arg11: memref<1x128xf32, #tpu.memory_space<vmem>>, %arg12: memref<128x32xf32, #tpu.memory_space<vmem>>, %arg13: memref<1x32xf32, #tpu.memory_space<vmem>>, %arg14: memref<16x32xf32, #tpu.memory_space<vmem>>) attributes {dimension_semantics = [#tpu.dimension_semantics<arbitrary>], iteration_bounds = array<i64: 1>, scalar_prefetch = 0 : i64, scratch_operands = 0 : i64, tpu.core_type = #tpu.core_type<tc>, window_params = [{pipeline_mode = #tpu.pipeline_mode<synchronous>, transform_indices = @transform_0, window_bounds = array<i64: 16, 32>}, {pipeline_mode = #tpu.pipeline_mode<synchronous>, transform_indices = @transform_1, window_bounds = array<i64: 1, 32>}, {pipeline_mode = #tpu.pipeline_mode<synchronous>, transform_indices = @transform_2, window_bounds = array<i64: 1, 32>}, {pipeline_mode = #tpu.pipeline_mode<synchronous>, transform_indices = @transform_3, window_bounds = array<i64: 32, 96>}, {pipeline_mode = #tpu.pipeline_mode<synchronous>, transform_indices = @transform_4, window_bounds = array<i64: 1, 96>}, {pipeline_mode = #tpu.pipeline_mode<synchronous>, transform_indices = @transform_5, window_bounds = array<i64: 32, 32>}, {pipeline_mode = #tpu.pipeline_mode<synchronous>, transform_indices = @transform_6, window_bounds = array<i64: 1, 32>}, {pipeline_mode = #tpu.pipeline_mode<synchronous>, transform_indices = @transform_7, window_bounds = array<i64: 1, 32>}, {pipeline_mode = #tpu.pipeline_mode<synchronous>, transform_indices = @transform_8, window_bounds = array<i64: 1, 32>}, {pipeline_mode = #tpu.pipeline_mode<synchronous>, transform_indices = @transform_9, window_bounds = array<i64: 32, 128>}, {pipeline_mode = #tpu.pipeline_mode<synchronous>, transform_indices = @transform_10, window_bounds = array<i64: 1, 128>}, {pipeline_mode = #tpu.pipeline_mode<synchronous>, transform_indices = @transform_11, window_bounds = array<i64: 128, 32>}, {pipeline_mode = #tpu.pipeline_mode<synchronous>, transform_indices = @transform_12, window_bounds = array<i64: 1, 32>}, {pipeline_mode = #tpu.pipeline_mode<synchronous>, transform_indices = @transform_13, window_bounds = array<i64: 16, 32>}]} {
    %c0 = arith.constant 0 : index
    %c0_0 = arith.constant 0 : index
    %0 = vector.load %arg1[%c0, %c0_0] : memref<16x32xf32, #tpu.memory_space<vmem>>, vector<16x32xf32>
    %c0_1 = arith.constant 0 : index
    %c0_2 = arith.constant 0 : index
    %1 = vector.load %arg2[%c0_1, %c0_2] : memref<1x32xf32, #tpu.memory_space<vmem>>, vector<1x32xf32>
    %c0_3 = arith.constant 0 : index
    %c0_4 = arith.constant 0 : index
    %2 = vector.load %arg3[%c0_3, %c0_4] : memref<1x32xf32, #tpu.memory_space<vmem>>, vector<1x32xf32>
    %cst = arith.constant dense<0.000000e+00> : vector<16xf32>
    %3 = vector.multi_reduction <add>, %0, %cst [1] : vector<16x32xf32> to vector<16xf32>
    %4 = vector.shape_cast %3 : vector<16xf32> to vector<16x1xf32>
    %cst_5 = arith.constant 3.200000e+01 : f32
    %5 = vector.broadcast %cst_5 : f32 to vector<16x1xf32>
    %6 = arith.divf %4, %5 : vector<16x1xf32>
    %7 = vector.broadcast %6 : vector<16x1xf32> to vector<16x32xf32>
    %8 = arith.subf %0, %7 : vector<16x32xf32>
    %9 = arith.mulf %8, %8 : vector<16x32xf32>
    %cst_6 = arith.constant dense<0.000000e+00> : vector<16xf32>
    %10 = vector.multi_reduction <add>, %9, %cst_6 [1] : vector<16x32xf32> to vector<16xf32>
    %11 = vector.shape_cast %10 : vector<16xf32> to vector<16x1xf32>
    %cst_7 = arith.constant 3.200000e+01 : f32
    %12 = vector.broadcast %cst_7 : f32 to vector<16x1xf32>
    %13 = arith.divf %11, %12 : vector<16x1xf32>
    %14 = vector.broadcast %6 : vector<16x1xf32> to vector<16x32xf32>
    %15 = arith.subf %0, %14 : vector<16x32xf32>
    %cst_8 = arith.constant 9.99999974E-6 : f32
    %16 = vector.broadcast %cst_8 : f32 to vector<16x1xf32>
    %17 = arith.addf %13, %16 : vector<16x1xf32>
    %18 = math.rsqrt %17 : vector<16x1xf32>
    %19 = vector.broadcast %18 : vector<16x1xf32> to vector<16x32xf32>
    %20 = arith.mulf %15, %19 : vector<16x32xf32>
    %21 = vector.broadcast %1 : vector<1x32xf32> to vector<16x32xf32>
    %22 = arith.mulf %20, %21 : vector<16x32xf32>
    %23 = vector.broadcast %2 : vector<1x32xf32> to vector<16x32xf32>
    %24 = arith.addf %22, %23 : vector<16x32xf32>
    %c0_9 = arith.constant 0 : index
    %c0_10 = arith.constant 0 : index
    %25 = vector.load %arg4[%c0_9, %c0_10] : memref<32x96xf32, #tpu.memory_space<vmem>>, vector<32x96xf32>
    %cst_11 = arith.constant dense<0.000000e+00> : vector<16x96xf32>
    %26 = tpu.matmul %24, %25, %cst_11 {dimension_numbers = #tpu.dot_dimension_numbers<[1], [0], [0], [1], [0, 0, 1, 1], [], []>} : vector<16x32xf32>, vector<32x96xf32>, vector<16x96xf32> -> vector<16x96xf32>
    %c0_12 = arith.constant 0 : index
    %c0_13 = arith.constant 0 : index
    %27 = vector.load %arg5[%c0_12, %c0_13] : memref<1x96xf32, #tpu.memory_space<vmem>>, vector<1x96xf32>
    %28 = vector.broadcast %27 : vector<1x96xf32> to vector<16x96xf32>
    %29 = arith.addf %26, %28 : vector<16x96xf32>
    %30 = vector.extract_strided_slice %29 {offsets = [0, 0], sizes = [16, 32], strides = [1, 1]} : vector<16x96xf32> to vector<16x32xf32>
    %cst_14 = arith.constant 0.353553385 : f32
    %31 = vector.broadcast %cst_14 : f32 to vector<16x32xf32>
    %32 = arith.mulf %30, %31 : vector<16x32xf32>
    %33 = vector.extract_strided_slice %29 {offsets = [0, 32], sizes = [16, 32], strides = [1, 1]} : vector<16x96xf32> to vector<16x32xf32>
    %34 = vector.extract_strided_slice %29 {offsets = [0, 64], sizes = [16, 32], strides = [1, 1]} : vector<16x96xf32> to vector<16x32xf32>
    %35 = vector.extract_strided_slice %32 {offsets = [0, 0], sizes = [8, 8], strides = [1, 1]} : vector<16x32xf32> to vector<8x8xf32>
    %36 = vector.extract_strided_slice %32 {offsets = [0, 8], sizes = [8, 8], strides = [1, 1]} : vector<16x32xf32> to vector<8x8xf32>
    %37 = vector.extract_strided_slice %32 {offsets = [0, 16], sizes = [8, 8], strides = [1, 1]} : vector<16x32xf32> to vector<8x8xf32>
    %38 = vector.extract_strided_slice %32 {offsets = [0, 24], sizes = [8, 8], strides = [1, 1]} : vector<16x32xf32> to vector<8x8xf32>
    %39 = vector.extract_strided_slice %32 {offsets = [8, 0], sizes = [8, 8], strides = [1, 1]} : vector<16x32xf32> to vector<8x8xf32>
    %40 = vector.extract_strided_slice %32 {offsets = [8, 8], sizes = [8, 8], strides = [1, 1]} : vector<16x32xf32> to vector<8x8xf32>
    %41 = vector.extract_strided_slice %32 {offsets = [8, 16], sizes = [8, 8], strides = [1, 1]} : vector<16x32xf32> to vector<8x8xf32>
    %42 = vector.extract_strided_slice %32 {offsets = [8, 24], sizes = [8, 8], strides = [1, 1]} : vector<16x32xf32> to vector<8x8xf32>
    %43 = vector.shape_cast %35 : vector<8x8xf32> to vector<1x8x8xf32>
    %44 = vector.shape_cast %36 : vector<8x8xf32> to vector<1x8x8xf32>
    %45 = vector.shape_cast %37 : vector<8x8xf32> to vector<1x8x8xf32>
    %46 = vector.shape_cast %38 : vector<8x8xf32> to vector<1x8x8xf32>
    %47 = vector.shape_cast %39 : vector<8x8xf32> to vector<1x8x8xf32>
    %48 = vector.shape_cast %40 : vector<8x8xf32> to vector<1x8x8xf32>
    %49 = vector.shape_cast %41 : vector<8x8xf32> to vector<1x8x8xf32>
    %50 = vector.shape_cast %42 : vector<8x8xf32> to vector<1x8x8xf32>
    %51 = tpu.concatenate %43, %44, %45, %46, %47, %48, %49, %50 in 0 : vector<1x8x8xf32>, vector<1x8x8xf32>, vector<1x8x8xf32>, vector<1x8x8xf32>, vector<1x8x8xf32>, vector<1x8x8xf32>, vector<1x8x8xf32>, vector<1x8x8xf32> -> vector<8x8x8xf32>
    %52 = vector.extract_strided_slice %33 {offsets = [0, 0], sizes = [8, 8], strides = [1, 1]} : vector<16x32xf32> to vector<8x8xf32>
    %53 = vector.extract_strided_slice %33 {offsets = [0, 8], sizes = [8, 8], strides = [1, 1]} : vector<16x32xf32> to vector<8x8xf32>
    %54 = vector.extract_strided_slice %33 {offsets = [0, 16], sizes = [8, 8], strides = [1, 1]} : vector<16x32xf32> to vector<8x8xf32>
    %55 = vector.extract_strided_slice %33 {offsets = [0, 24], sizes = [8, 8], strides = [1, 1]} : vector<16x32xf32> to vector<8x8xf32>
    %56 = vector.extract_strided_slice %33 {offsets = [8, 0], sizes = [8, 8], strides = [1, 1]} : vector<16x32xf32> to vector<8x8xf32>
    %57 = vector.extract_strided_slice %33 {offsets = [8, 8], sizes = [8, 8], strides = [1, 1]} : vector<16x32xf32> to vector<8x8xf32>
    %58 = vector.extract_strided_slice %33 {offsets = [8, 16], sizes = [8, 8], strides = [1, 1]} : vector<16x32xf32> to vector<8x8xf32>
    %59 = vector.extract_strided_slice %33 {offsets = [8, 24], sizes = [8, 8], strides = [1, 1]} : vector<16x32xf32> to vector<8x8xf32>
    %60 = vector.shape_cast %52 : vector<8x8xf32> to vector<1x8x8xf32>
    %61 = vector.shape_cast %53 : vector<8x8xf32> to vector<1x8x8xf32>
    %62 = vector.shape_cast %54 : vector<8x8xf32> to vector<1x8x8xf32>
    %63 = vector.shape_cast %55 : vector<8x8xf32> to vector<1x8x8xf32>
    %64 = vector.shape_cast %56 : vector<8x8xf32> to vector<1x8x8xf32>
    %65 = vector.shape_cast %57 : vector<8x8xf32> to vector<1x8x8xf32>
    %66 = vector.shape_cast %58 : vector<8x8xf32> to vector<1x8x8xf32>
    %67 = vector.shape_cast %59 : vector<8x8xf32> to vector<1x8x8xf32>
    %68 = tpu.concatenate %60, %61, %62, %63, %64, %65, %66, %67 in 0 : vector<1x8x8xf32>, vector<1x8x8xf32>, vector<1x8x8xf32>, vector<1x8x8xf32>, vector<1x8x8xf32>, vector<1x8x8xf32>, vector<1x8x8xf32>, vector<1x8x8xf32> -> vector<8x8x8xf32>
    %69 = vector.extract_strided_slice %34 {offsets = [0, 0], sizes = [8, 8], strides = [1, 1]} : vector<16x32xf32> to vector<8x8xf32>
    %70 = vector.extract_strided_slice %34 {offsets = [0, 8], sizes = [8, 8], strides = [1, 1]} : vector<16x32xf32> to vector<8x8xf32>
    %71 = vector.extract_strided_slice %34 {offsets = [0, 16], sizes = [8, 8], strides = [1, 1]} : vector<16x32xf32> to vector<8x8xf32>
    %72 = vector.extract_strided_slice %34 {offsets = [0, 24], sizes = [8, 8], strides = [1, 1]} : vector<16x32xf32> to vector<8x8xf32>
    %73 = vector.extract_strided_slice %34 {offsets = [8, 0], sizes = [8, 8], strides = [1, 1]} : vector<16x32xf32> to vector<8x8xf32>
    %74 = vector.extract_strided_slice %34 {offsets = [8, 8], sizes = [8, 8], strides = [1, 1]} : vector<16x32xf32> to vector<8x8xf32>
    %75 = vector.extract_strided_slice %34 {offsets = [8, 16], sizes = [8, 8], strides = [1, 1]} : vector<16x32xf32> to vector<8x8xf32>
    %76 = vector.extract_strided_slice %34 {offsets = [8, 24], sizes = [8, 8], strides = [1, 1]} : vector<16x32xf32> to vector<8x8xf32>
    %77 = vector.shape_cast %69 : vector<8x8xf32> to vector<1x8x8xf32>
    %78 = vector.shape_cast %70 : vector<8x8xf32> to vector<1x8x8xf32>
    %79 = vector.shape_cast %71 : vector<8x8xf32> to vector<1x8x8xf32>
    %80 = vector.shape_cast %72 : vector<8x8xf32> to vector<1x8x8xf32>
    %81 = vector.shape_cast %73 : vector<8x8xf32> to vector<1x8x8xf32>
    %82 = vector.shape_cast %74 : vector<8x8xf32> to vector<1x8x8xf32>
    %83 = vector.shape_cast %75 : vector<8x8xf32> to vector<1x8x8xf32>
    %84 = vector.shape_cast %76 : vector<8x8xf32> to vector<1x8x8xf32>
    %85 = tpu.concatenate %77, %78, %79, %80, %81, %82, %83, %84 in 0 : vector<1x8x8xf32>, vector<1x8x8xf32>, vector<1x8x8xf32>, vector<1x8x8xf32>, vector<1x8x8xf32>, vector<1x8x8xf32>, vector<1x8x8xf32>, vector<1x8x8xf32> -> vector<8x8x8xf32>
    "tpu.trace_start"() <{level = 10 : i32, message = "gqd,gkd->gqk"}> : () -> ()
    %cst_15 = arith.constant dense<0.000000e+00> : vector<8x8x8xf32>
    %86 = tpu.matmul %51, %68, %cst_15 {dimension_numbers = #tpu.dot_dimension_numbers<[2], [2], [1], [1], [0, 0, 0, 1, 1, 1], [0], [0]>} : vector<8x8x8xf32>, vector<8x8x8xf32>, vector<8x8x8xf32> -> vector<8x8x8xf32>
    "tpu.trace_stop"() : () -> ()
    %cst_16 = arith.constant dense<0xFF800000> : vector<8x8xf32>
    %87 = vector.multi_reduction <maximumf>, %86, %cst_16 [2] : vector<8x8x8xf32> to vector<8x8xf32>
    %88 = vector.shape_cast %87 : vector<8x8xf32> to vector<8x8x1xf32>
    %89 = vector.broadcast %88 : vector<8x8x1xf32> to vector<8x8x8xf32>
    %90 = arith.subf %86, %89 : vector<8x8x8xf32>
    %91 = math.exp %90 : vector<8x8x8xf32>
    %cst_17 = arith.constant dense<0.000000e+00> : vector<8x8xf32>
    %92 = vector.multi_reduction <add>, %91, %cst_17 [2] : vector<8x8x8xf32> to vector<8x8xf32>
    %93 = vector.shape_cast %92 : vector<8x8xf32> to vector<8x8x1xf32>
    %94 = tpu.reciprocal %93 {approx = true} : vector<8x8x1xf32> -> vector<8x8x1xf32>
    %95 = vector.broadcast %94 : vector<8x8x1xf32> to vector<8x8x8xf32>
    %96 = arith.mulf %91, %95 : vector<8x8x8xf32>
    "tpu.trace_start"() <{level = 10 : i32, message = "gqk,gkd->gqd"}> : () -> ()
    %cst_18 = arith.constant dense<0.000000e+00> : vector<8x8x8xf32>
    %97 = tpu.matmul %96, %85, %cst_18 {dimension_numbers = #tpu.dot_dimension_numbers<[2], [1], [1], [2], [0, 0, 0, 1, 1, 2], [0], [0]>} : vector<8x8x8xf32>, vector<8x8x8xf32>, vector<8x8x8xf32> -> vector<8x8x8xf32>
    "tpu.trace_stop"() : () -> ()
    %98 = vector.extract_strided_slice %97 {offsets = [0, 0, 0], sizes = [1, 8, 8], strides = [1, 1, 1]} : vector<8x8x8xf32> to vector<1x8x8xf32>
    %99 = vector.shape_cast %98 : vector<1x8x8xf32> to vector<8x8xf32>
    %100 = vector.extract_strided_slice %97 {offsets = [1, 0, 0], sizes = [1, 8, 8], strides = [1, 1, 1]} : vector<8x8x8xf32> to vector<1x8x8xf32>
    %101 = vector.shape_cast %100 : vector<1x8x8xf32> to vector<8x8xf32>
    %102 = vector.extract_strided_slice %97 {offsets = [2, 0, 0], sizes = [1, 8, 8], strides = [1, 1, 1]} : vector<8x8x8xf32> to vector<1x8x8xf32>
    %103 = vector.shape_cast %102 : vector<1x8x8xf32> to vector<8x8xf32>
    %104 = vector.extract_strided_slice %97 {offsets = [3, 0, 0], sizes = [1, 8, 8], strides = [1, 1, 1]} : vector<8x8x8xf32> to vector<1x8x8xf32>
    %105 = vector.shape_cast %104 : vector<1x8x8xf32> to vector<8x8xf32>
    %106 = tpu.concatenate %99, %101, %103, %105 in 1 : vector<8x8xf32>, vector<8x8xf32>, vector<8x8xf32>, vector<8x8xf32> -> vector<8x32xf32>
    %107 = vector.extract_strided_slice %97 {offsets = [4, 0, 0], sizes = [1, 8, 8], strides = [1, 1, 1]} : vector<8x8x8xf32> to vector<1x8x8xf32>
    %108 = vector.shape_cast %107 : vector<1x8x8xf32> to vector<8x8xf32>
    %109 = vector.extract_strided_slice %97 {offsets = [5, 0, 0], sizes = [1, 8, 8], strides = [1, 1, 1]} : vector<8x8x8xf32> to vector<1x8x8xf32>
    %110 = vector.shape_cast %109 : vector<1x8x8xf32> to vector<8x8xf32>
    %111 = vector.extract_strided_slice %97 {offsets = [6, 0, 0], sizes = [1, 8, 8], strides = [1, 1, 1]} : vector<8x8x8xf32> to vector<1x8x8xf32>
    %112 = vector.shape_cast %111 : vector<1x8x8xf32> to vector<8x8xf32>
    %113 = vector.extract_strided_slice %97 {offsets = [7, 0, 0], sizes = [1, 8, 8], strides = [1, 1, 1]} : vector<8x8x8xf32> to vector<1x8x8xf32>
    %114 = vector.shape_cast %113 : vector<1x8x8xf32> to vector<8x8xf32>
    %115 = tpu.concatenate %108, %110, %112, %114 in 1 : vector<8x8xf32>, vector<8x8xf32>, vector<8x8xf32>, vector<8x8xf32> -> vector<8x32xf32>
    %116 = tpu.concatenate %106, %115 in 0 : vector<8x32xf32>, vector<8x32xf32> -> vector<16x32xf32>
    %c0_19 = arith.constant 0 : index
    %c0_20 = arith.constant 0 : index
    %117 = vector.load %arg6[%c0_19, %c0_20] : memref<32x32xf32, #tpu.memory_space<vmem>>, vector<32x32xf32>
    %cst_21 = arith.constant dense<0.000000e+00> : vector<16x32xf32>
    %118 = tpu.matmul %116, %117, %cst_21 {dimension_numbers = #tpu.dot_dimension_numbers<[1], [0], [0], [1], [0, 0, 1, 1], [], []>} : vector<16x32xf32>, vector<32x32xf32>, vector<16x32xf32> -> vector<16x32xf32>
    %c0_22 = arith.constant 0 : index
    %c0_23 = arith.constant 0 : index
    %119 = vector.load %arg7[%c0_22, %c0_23] : memref<1x32xf32, #tpu.memory_space<vmem>>, vector<1x32xf32>
    %120 = vector.broadcast %119 : vector<1x32xf32> to vector<16x32xf32>
    %121 = arith.addf %118, %120 : vector<16x32xf32>
    %122 = arith.addf %0, %121 : vector<16x32xf32>
    %c0_24 = arith.constant 0 : index
    %c0_25 = arith.constant 0 : index
    %123 = vector.load %arg8[%c0_24, %c0_25] : memref<1x32xf32, #tpu.memory_space<vmem>>, vector<1x32xf32>
    %c0_26 = arith.constant 0 : index
    %c0_27 = arith.constant 0 : index
    %124 = vector.load %arg9[%c0_26, %c0_27] : memref<1x32xf32, #tpu.memory_space<vmem>>, vector<1x32xf32>
    %cst_28 = arith.constant dense<0.000000e+00> : vector<16xf32>
    %125 = vector.multi_reduction <add>, %122, %cst_28 [1] : vector<16x32xf32> to vector<16xf32>
    %126 = vector.shape_cast %125 : vector<16xf32> to vector<16x1xf32>
    %cst_29 = arith.constant 3.200000e+01 : f32
    %127 = vector.broadcast %cst_29 : f32 to vector<16x1xf32>
    %128 = arith.divf %126, %127 : vector<16x1xf32>
    %129 = vector.broadcast %128 : vector<16x1xf32> to vector<16x32xf32>
    %130 = arith.subf %122, %129 : vector<16x32xf32>
    %131 = arith.mulf %130, %130 : vector<16x32xf32>
    %cst_30 = arith.constant dense<0.000000e+00> : vector<16xf32>
    %132 = vector.multi_reduction <add>, %131, %cst_30 [1] : vector<16x32xf32> to vector<16xf32>
    %133 = vector.shape_cast %132 : vector<16xf32> to vector<16x1xf32>
    %cst_31 = arith.constant 3.200000e+01 : f32
    %134 = vector.broadcast %cst_31 : f32 to vector<16x1xf32>
    %135 = arith.divf %133, %134 : vector<16x1xf32>
    %136 = vector.broadcast %128 : vector<16x1xf32> to vector<16x32xf32>
    %137 = arith.subf %122, %136 : vector<16x32xf32>
    %cst_32 = arith.constant 9.99999974E-6 : f32
    %138 = vector.broadcast %cst_32 : f32 to vector<16x1xf32>
    %139 = arith.addf %135, %138 : vector<16x1xf32>
    %140 = math.rsqrt %139 : vector<16x1xf32>
    %141 = vector.broadcast %140 : vector<16x1xf32> to vector<16x32xf32>
    %142 = arith.mulf %137, %141 : vector<16x32xf32>
    %143 = vector.broadcast %123 : vector<1x32xf32> to vector<16x32xf32>
    %144 = arith.mulf %142, %143 : vector<16x32xf32>
    %145 = vector.broadcast %124 : vector<1x32xf32> to vector<16x32xf32>
    %146 = arith.addf %144, %145 : vector<16x32xf32>
    %c0_33 = arith.constant 0 : index
    %c0_34 = arith.constant 0 : index
    %147 = vector.load %arg10[%c0_33, %c0_34] : memref<32x128xf32, #tpu.memory_space<vmem>>, vector<32x128xf32>
    %cst_35 = arith.constant dense<0.000000e+00> : vector<16x128xf32>
    %148 = tpu.matmul %146, %147, %cst_35 {dimension_numbers = #tpu.dot_dimension_numbers<[1], [0], [0], [1], [0, 0, 1, 1], [], []>} : vector<16x32xf32>, vector<32x128xf32>, vector<16x128xf32> -> vector<16x128xf32>
    %c0_36 = arith.constant 0 : index
    %c0_37 = arith.constant 0 : index
    %149 = vector.load %arg11[%c0_36, %c0_37] : memref<1x128xf32, #tpu.memory_space<vmem>>, vector<1x128xf32>
    %150 = vector.broadcast %149 : vector<1x128xf32> to vector<16x128xf32>
    %151 = arith.addf %148, %150 : vector<16x128xf32>
    %cst_38 = arith.constant 5.000000e-01 : f32
    %152 = vector.broadcast %cst_38 : f32 to vector<16x128xf32>
    %153 = arith.mulf %152, %151 : vector<16x128xf32>
    %cst_39 = arith.constant 0.707106769 : f32
    %154 = vector.broadcast %cst_39 : f32 to vector<16x128xf32>
    %155 = arith.mulf %151, %154 : vector<16x128xf32>
    %156 = math.erf %155 : vector<16x128xf32>
    %cst_40 = arith.constant 1.000000e+00 : f32
    %157 = vector.broadcast %cst_40 : f32 to vector<16x128xf32>
    %158 = arith.addf %157, %156 : vector<16x128xf32>
    %159 = arith.mulf %153, %158 : vector<16x128xf32>
    %c0_41 = arith.constant 0 : index
    %c0_42 = arith.constant 0 : index
    %160 = vector.load %arg12[%c0_41, %c0_42] : memref<128x32xf32, #tpu.memory_space<vmem>>, vector<128x32xf32>
    %cst_43 = arith.constant dense<0.000000e+00> : vector<16x32xf32>
    %161 = tpu.matmul %159, %160, %cst_43 {dimension_numbers = #tpu.dot_dimension_numbers<[1], [0], [0], [1], [0, 0, 1, 1], [], []>} : vector<16x128xf32>, vector<128x32xf32>, vector<16x32xf32> -> vector<16x32xf32>
    %c0_44 = arith.constant 0 : index
    %c0_45 = arith.constant 0 : index
    %162 = vector.load %arg13[%c0_44, %c0_45] : memref<1x32xf32, #tpu.memory_space<vmem>>, vector<1x32xf32>
    %163 = vector.broadcast %162 : vector<1x32xf32> to vector<16x32xf32>
    %164 = arith.addf %161, %163 : vector<16x32xf32>
    %165 = arith.addf %122, %164 : vector<16x32xf32>
    %c0_46 = arith.constant 0 : index
    %c0_47 = arith.constant 0 : index
    %166 = vector.load %arg14[%c0_46, %c0_47] : memref<16x32xf32, #tpu.memory_space<vmem>>, vector<16x32xf32>
    tpu.vector_store %arg14[%c0_46, %c0_47], %165 {strides = array<i32>} : memref<16x32xf32, #tpu.memory_space<vmem>>, vector<16x32xf32>,
    return
  }
  func.func @transform_0(%arg0: i32) -> (i32, i32) {
    %c0_i32 = arith.constant 0 : i32
    %c0_i32_0 = arith.constant 0 : i32
    %c0_i32_1 = arith.constant 0 : i32
    return %c0_i32, %c0_i32_0 : i32, i32
  }
  func.func @transform_1(%arg0: i32) -> (i32, i32) {
    %c0_i32 = arith.constant 0 : i32
    %c0_i32_0 = arith.constant 0 : i32
    %c0_i32_1 = arith.constant 0 : i32
    return %c0_i32, %c0_i32_0 : i32, i32
  }
  func.func @transform_2(%arg0: i32) -> (i32, i32) {
    %c0_i32 = arith.constant 0 : i32
    %c0_i32_0 = arith.constant 0 : i32
    %c0_i32_1 = arith.constant 0 : i32
    return %c0_i32, %c0_i32_0 : i32, i32
  }
  func.func @transform_3(%arg0: i32) -> (i32, i32) {
    %c0_i32 = arith.constant 0 : i32
    %c0_i32_0 = arith.constant 0 : i32
    %c0_i32_1 = arith.constant 0 : i32
    return %c0_i32, %c0_i32_0 : i32, i32
  }
  func.func @transform_4(%arg0: i32) -> (i32, i32) {
    %c0_i32 = arith.constant 0 : i32
    %c0_i32_0 = arith.constant 0 : i32
    %c0_i32_1 = arith.constant 0 : i32
    return %c0_i32, %c0_i32_0 : i32, i32
  }
  func.func @transform_5(%arg0: i32) -> (i32, i32) {
    %c0_i32 = arith.constant 0 : i32
    %c0_i32_0 = arith.constant 0 : i32
    %c0_i32_1 = arith.constant 0 : i32
    return %c0_i32, %c0_i32_0 : i32, i32
  }
  func.func @transform_6(%arg0: i32) -> (i32, i32) {
    %c0_i32 = arith.constant 0 : i32
    %c0_i32_0 = arith.constant 0 : i32
    %c0_i32_1 = arith.constant 0 : i32
    return %c0_i32, %c0_i32_0 : i32, i32
  }
  func.func @transform_7(%arg0: i32) -> (i32, i32) {
    %c0_i32 = arith.constant 0 : i32
    %c0_i32_0 = arith.constant 0 : i32
    %c0_i32_1 = arith.constant 0 : i32
    return %c0_i32, %c0_i32_0 : i32, i32
  }
  func.func @transform_8(%arg0: i32) -> (i32, i32) {
    %c0_i32 = arith.constant 0 : i32
    %c0_i32_0 = arith.constant 0 : i32
    %c0_i32_1 = arith.constant 0 : i32
    return %c0_i32, %c0_i32_0 : i32, i32
  }
  func.func @transform_9(%arg0: i32) -> (i32, i32) {
    %c0_i32 = arith.constant 0 : i32
    %c0_i32_0 = arith.constant 0 : i32
    %c0_i32_1 = arith.constant 0 : i32
    return %c0_i32, %c0_i32_0 : i32, i32
  }
  func.func @transform_10(%arg0: i32) -> (i32, i32) {
    %c0_i32 = arith.constant 0 : i32
    %c0_i32_0 = arith.constant 0 : i32
    %c0_i32_1 = arith.constant 0 : i32
    return %c0_i32, %c0_i32_0 : i32, i32
  }
  func.func @transform_11(%arg0: i32) -> (i32, i32) {
    %c0_i32 = arith.constant 0 : i32
    %c0_i32_0 = arith.constant 0 : i32
    %c0_i32_1 = arith.constant 0 : i32
    return %c0_i32, %c0_i32_0 : i32, i32
  }
  func.func @transform_12(%arg0: i32) -> (i32, i32) {
    %c0_i32 = arith.constant 0 : i32
    %c0_i32_0 = arith.constant 0 : i32
    %c0_i32_1 = arith.constant 0 : i32
    return %c0_i32, %c0_i32_0 : i32, i32
  }
  func.func @transform_13(%arg0: i32) -> (i32, i32) {
    %c0_i32 = arith.constant 0 : i32
    %c0_i32_0 = arith.constant 0 : i32
    %c0_i32_1 = arith.constant 0 : i32
    return %c0_i32, %c0_i32_0 : i32, i32
  }
}

</mosaic_0001>

<llo_original>
// kernel: tpu_custom_call.1
$region0: #{tpu_custom_call.1}
  #allocation0 [shape = 'u32[]', space=smem, size = 0x4, offset = 0x4, fixed_abs, tag = 'smem constant byte address 0x4 - core index']
  #allocation1 [shape = 'u32[144,128]{1,0:T(1,128)}', space=vmem, size = 0x12000, scoped, tag = 'internal scratch']
  %s0 = inlined_call_operand.vmem [shape: f32[16,32], index: 0, kind: input, shape index: {}]
  %s1 = inlined_call_operand.vmem [shape: f32[1,32], index: 1, kind: input, shape index: {}]
  %s2 = inlined_call_operand.vmem [shape: f32[1,32], index: 2, kind: input, shape index: {}]
  %s3 = inlined_call_operand.vmem [shape: f32[32,96], index: 3, kind: input, shape index: {}]
  %s4 = inlined_call_operand.vmem [shape: f32[1,96], index: 4, kind: input, shape index: {}]
  %s5 = inlined_call_operand.vmem [shape: f32[32,32], index: 5, kind: input, shape index: {}]
  %s6 = inlined_call_operand.vmem [shape: f32[1,32], index: 6, kind: input, shape index: {}]
  %s7 = inlined_call_operand.vmem [shape: f32[1,32], index: 7, kind: input, shape index: {}]
  %s8 = inlined_call_operand.vmem [shape: f32[1,32], index: 8, kind: input, shape index: {}]
  %s9 = inlined_call_operand.vmem [shape: f32[32,128], index: 9, kind: input, shape index: {}]
  %s10 = inlined_call_operand.vmem [shape: f32[1,128], index: 10, kind: input, shape index: {}]
  %s11 = inlined_call_operand.vmem [shape: f32[128,32], index: 11, kind: input, shape index: {}]
  %s12 = inlined_call_operand.vmem [shape: f32[1,32], index: 12, kind: input, shape index: {}]
  %s13 = inlined_call_operand.hbm [shape: f32[16,32], index: 13, kind: output, shape index: {}]
  %s14 = sld [smem:[#allocation0]]
  $region62: #{tpu_custom_call.1} parent=0
    _
  %s16 = ssub.s32 1, %s14
  %s17 = scalar_select 0, %s16, %s14
  $region1: #{tpu_custom_call.1} parent=0
    #allocation2 [shape = 'u8[8192]{0}', space=vmem, size = 0x2000, scoped, tag = 'output window, operand 0, single buffered']
    #allocation3 [shape = 's32[1]{0}', space=sflag, size = 0x4, scoped, tag = 'scoped memory for tpu_custom_call.1']
    %18 = vsyncpa [#allocation3], 0
    // Predicated region
    $region2: #{tpu_custom_call.1} parent=1 // pred_check
      _
    $region3: #{tpu_custom_call.1} parent=1 // pred_check_branch
      %20 = sbr.rel (0) target = $region5
    $region4: #{tpu_custom_call.1} parent=1 // pred_region
      _
    $region5: #{tpu_custom_call.1} parent=1 // pred_fallthru
      _
    // Predicated region
    $region6: #{tpu_custom_call.1} parent=1 // pred_check
      _
    $region7: #{tpu_custom_call.1} parent=1 // pred_check_branch
      %22 = sbr.rel (0) target = $region9
    $region8: #{tpu_custom_call.1} parent=1 // pred_region
      _
    $region9: #{tpu_custom_call.1} parent=1 // pred_fallthru
      _
    // Predicated region
    $region10: #{tpu_custom_call.1} parent=1 // pred_check
      _
    $region11: #{tpu_custom_call.1} parent=1 // pred_check_branch
      %24 = sbr.rel (0) target = $region13
    $region12: #{tpu_custom_call.1} parent=1 // pred_region
      _
    $region13: #{tpu_custom_call.1} parent=1 // pred_fallthru
      _
    // Predicated region
    $region14: #{tpu_custom_call.1} parent=1 // pred_check
      _
    $region15: #{tpu_custom_call.1} parent=1 // pred_check_branch
      %26 = sbr.rel (0) target = $region17
    $region16: #{tpu_custom_call.1} parent=1 // pred_region
      _
    $region17: #{tpu_custom_call.1} parent=1 // pred_fallthru
      _
    // Predicated region
    $region18: #{tpu_custom_call.1} parent=1 // pred_check
      _
    $region19: #{tpu_custom_call.1} parent=1 // pred_check_branch
      %28 = sbr.rel (0) target = $region21
    $region20: #{tpu_custom_call.1} parent=1 // pred_region
      _
    $region21: #{tpu_custom_call.1} parent=1 // pred_fallthru
      _
    // Predicated region
    $region22: #{tpu_custom_call.1} parent=1 // pred_check
      _
    $region23: #{tpu_custom_call.1} parent=1 // pred_check_branch
      %30 = sbr.rel (0) target = $region25
    $region24: #{tpu_custom_call.1} parent=1 // pred_region
      _
    $region25: #{tpu_custom_call.1} parent=1 // pred_fallthru
      _
    // Predicated region
    $region26: #{tpu_custom_call.1} parent=1 // pred_check
      _
    $region27: #{tpu_custom_call.1} parent=1 // pred_check_branch
      %32 = sbr.rel (0) target = $region29
    $region28: #{tpu_custom_call.1} parent=1 // pred_region
      _
    $region29: #{tpu_custom_call.1} parent=1 // pred_fallthru
      _
    // Predicated region
    $region30: #{tpu_custom_call.1} parent=1 // pred_check
      _
    $region31: #{tpu_custom_call.1} parent=1 // pred_check_branch
      %34 = sbr.rel (0) target = $region33
    $region32: #{tpu_custom_call.1} parent=1 // pred_region
      _
    $region33: #{tpu_custom_call.1} parent=1 // pred_fallthru
      _
    // Predicated region
    $region34: #{tpu_custom_call.1} parent=1 // pred_check
      _
    $region35: #{tpu_custom_call.1} parent=1 // pred_check_branch
      %36 = sbr.rel (0) target = $region37
    $region36: #{tpu_custom_call.1} parent=1 // pred_region
      _
    $region37: #{tpu_custom_call.1} parent=1 // pred_fallthru
      _
    // Predicated region
    $region38: #{tpu_custom_call.1} parent=1 // pred_check
      _
    $region39: #{tpu_custom_call.1} parent=1 // pred_check_branch
      %38 = sbr.rel (0) target = $region41
    $region40: #{tpu_custom_call.1} parent=1 // pred_region
      _
    $region41: #{tpu_custom_call.1} parent=1 // pred_fallthru
      _
    // Predicated region
    $region42: #{tpu_custom_call.1} parent=1 // pred_check
      _
    $region43: #{tpu_custom_call.1} parent=1 // pred_check_branch
      %40 = sbr.rel (0) target = $region45
    $region44: #{tpu_custom_call.1} parent=1 // pred_region
      _
    $region45: #{tpu_custom_call.1} parent=1 // pred_fallthru
      _
    // Predicated region
    $region46: #{tpu_custom_call.1} parent=1 // pred_check
      _
    $region47: #{tpu_custom_call.1} parent=1 // pred_check_branch
      %42 = sbr.rel (0) target = $region49
    $region48: #{tpu_custom_call.1} parent=1 // pred_region
      _
    $region49: #{tpu_custom_call.1} parent=1 // pred_fallthru
      _
    // Predicated region
    $region50: #{tpu_custom_call.1} parent=1 // pred_check
      _
    $region51: #{tpu_custom_call.1} parent=1 // pred_check_branch
      %44 = sbr.rel (0) target = $region53
    $region52: #{tpu_custom_call.1} parent=1 // pred_region
      _
    $region53: #{tpu_custom_call.1} parent=1 // pred_fallthru
      _
    %v45 = vld [vmem:[%s0] sm:$0xff]
    %v46 = vld [vmem:[%s0 + $0x8] sm:$0xff]
    %v47 = vld [vmem:[%s1] sm:$0x1]
    %v48 = vld [vmem:[%s2] sm:$0x1]
    %vm49 = vcmask 261120
    %v50 = vsel %vm49, %v45, 0.0
    %51 = vadd.xlane.f32.xlu0 %v50
    %v52 = vpop.xlane.xlu0 %51
    %v53 = vsel %vm49, %v46, 0.0
    %54 = vadd.xlane.f32.xlu0 %v53
    %v55 = vpop.xlane.xlu0 %54
    %v56 = vrcp.pop 32.0
    %v57 = vmul.f32 %v52, %v56
    %v58 = vmul.f32 %v55, %v56
    %v59 = vsub.f32 %v45, %v57
    %v60 = vsub.f32 %v46, %v58
    %v61 = vmul.f32 %v59, %v59
    %v62 = vmul.f32 %v60, %v60
    %v63 = vsel %vm49, %v61, 0.0
    %64 = vadd.xlane.f32.xlu0 %v63
    %v65 = vpop.xlane.xlu0 %64
    %v66 = vsel %vm49, %v62, 0.0
    %67 = vadd.xlane.f32.xlu0 %v66
    %v68 = vpop.xlane.xlu0 %67
    %v69 = vmul.f32 %v65, %v56
    %v70 = vmul.f32 %v68, %v56
    %v71 = vadd.f32 %v69, 1e-05
    %v72 = vadd.f32 %v70, 1e-05
    %v73 = vrsqrt.pop %v71
    %v74 = vrsqrt.pop %v72
    %v75 = vmul.f32 %v59, %v73
    %v76 = vmul.f32 %v60, %v74
    %v78 = vlaneseq
    %v79 = vshrl.u32 %v78, 7
    %v80 = vsub.s32 0, %v79
    %v81 = vrot.slane %v47, %v80
    %v83 = vmul.f32 %v75, %v81
    %v84 = vmul.f32 %v76, %v81
    %v86 = vlaneseq
    %v87 = vshrl.u32 %v86, 7
    %v88 = vsub.s32 0, %v87
    %v89 = vrot.slane %v48, %v88
    %v91 = vadd.f32 %v83, %v89
    %v92 = vadd.f32 %v84, %v89
    %v93 = vld [vmem:[%s3] sm:$0xff]
    %v94 = vld [vmem:[%s3 + $0x8] sm:$0xff]
    %v95 = vld [vmem:[%s3 + $0x10] sm:$0xff]
    %v96 = vld [vmem:[%s3 + $0x18] sm:$0xff]
    %v97 = vld [vmem:[%s4] sm:$0x1]
    %v99 = vlaneseq
    %v100 = vshrl.u32 %v99, 7
    %v101 = vsub.s32 0, %v100
    %v102 = vrot.slane %v97, %v101
    %v105 = vsel %vm49, %v91, 0
    %v108 = vsel %vm49, %v92, 0
    %110 = vmatprep.subr.mxu0 0.0
    %111 = vmatpush1.msra.mxu0 %v93
    %112 = vmatprep.subr.mxu0 0.0
    %113 = vmatpush1.msra.mxu0 %v94
    %114 = vmatprep.subr.mxu0 0.0
    %115 = vmatpush1.msra.mxu0 %v95
    %116 = vmatprep.subr.mxu0 0.0
    %117 = vmatpush1.msra.mxu0 %v96
    %118 = vmatprep.subr.mxu0 0.0
    %119 = vmatpush1.msra.mxu0 0.0
    %120 = vmatprep.subr.mxu0 0.0
    %121 = vmatpush1.msra.mxu0 0.0
    %122 = vmatprep.subr.mxu0 0.0
    %123 = vmatpush1.msra.mxu0 0.0
    %124 = vmatprep.subr.mxu0 0.0
    %125 = vmatpush1.msra.mxu0 0.0
    %126 = vmatprep.subr.mxu0 0.0
    %127 = vmatpush1.msra.mxu0 0.0
    %128 = vmatprep.subr.mxu0 0.0
    %129 = vmatpush1.msra.mxu0 0.0
    %130 = vmatprep.subr.mxu0 0.0
    %131 = vmatpush1.msra.mxu0 0.0
    %132 = vmatprep.subr.mxu0 0.0
    %133 = vmatpush1.msra.mxu0 0.0
    %134 = vmatprep.subr.mxu0 0.0
    %135 = vmatpush1.msra.mxu0 0.0
    %136 = vmatprep.subr.mxu0 0.0
    %137 = vmatpush1.msra.mxu0 0.0
    %138 = vmatprep.subr.mxu0 0.0
    %139 = vmatpush1.msra.mxu0 0.0
    %140 = vmatprep.subr.mxu0 0.0
    %141 = vmatpush1.msra.mxu0 0.0
    %142 = vmatprep.subr.mxu0 0.0
    %143 = vmatpush1.msra.mxu0 0.0
    %144 = vmatprep.subr.mxu0 0.0
    %145 = vmatpush1.msra.mxu0 0.0
    %146 = vmatprep.subr.mxu0 0.0
    %147 = vmatpush1.msra.mxu0 0.0
    %148 = vmatprep.subr.mxu0 0.0
    %149 = vmatpush1.msra.mxu0 0.0
    %150 = vmatprep.subr.mxu0 0.0
    %151 = vmatpush1.msra.mxu0 0.0
    %152 = vmatprep.subr.mxu0 0.0
    %153 = vmatpush1.msra.mxu0 0.0
    %154 = vmatprep.subr.mxu0 0.0
    %155 = vmatpush1.msra.mxu0 0.0
    %156 = vmatprep.subr.mxu0 0.0
    %157 = vmatpush1.msra.mxu0 0.0
    %158 = vmatprep.subr.mxu0 0.0
    %159 = vmatpush1.msra.mxu0 0.0
    %160 = vmatprep.subr.mxu0 0.0
    %161 = vmatpush1.msra.mxu0 0.0
    %162 = vmatprep.subr.mxu0 0.0
    %163 = vmatpush1.msra.mxu0 0.0
    %164 = vmatprep.subr.mxu0 0.0
    %165 = vmatpush1.msra.mxu0 0.0
    %166 = vmatprep.subr.mxu0 0.0
    %167 = vmatpush1.msra.mxu0 0.0
    %168 = vmatprep.subr.mxu0 0.0
    %169 = vmatpush1.msra.mxu0 0.0
    %170 = vmatprep.subr.mxu0 0.0
    %171 = vmatpush1.msra.mxu0 0.0
    %172 = vmatprep.subr.mxu0 0.0
    %173 = vmatpush1.msra.mxu0 0.0
    %174 = vmatprep.mubr.f32.mxu0 0.0
    %175 = vmatmul.mubr.f32.gmra.mrb[0].mxu0 %v105
    %v176 = vpop.f32.mrb[0].mxu0
    %v177 = vadd.f32 %v102, %v176
    %v178 = vpop.f32.mrb[0].mxu0
    %179 = vmatprep.mubr.f32.mxu0 0.0
    %180 = vmatmul.mubr.f32.gmra.mrb[0].mxu0 %v108
    %v181 = vpop.f32.mrb[0].mxu0
    %v182 = vadd.f32 %v102, %v181
    %v183 = vpop.f32.mrb[0].mxu0
    %184 = vdwg.mxu0
    %v185 = vmul.f32 %v177, 0.35355338
    %v186 = vmul.f32 %v182, 0.35355338
    %188 = vrot.lane.b32.xlu0 %v185, 120
    %v189 = vpop.permute.xlu0 %188
    %190 = vrot.lane.b32.xlu0 %v185, 112
    %v191 = vpop.permute.xlu0 %190
    %192 = vrot.lane.b32.xlu0 %v185, 104
    %v193 = vpop.permute.xlu0 %192
    %195 = vrot.lane.b32.xlu0 %v186, 120
    %v196 = vpop.permute.xlu0 %195
    %197 = vrot.lane.b32.xlu0 %v186, 112
    %v198 = vpop.permute.xlu0 %197
    %199 = vrot.lane.b32.xlu0 %v186, 104
    %v200 = vpop.permute.xlu0 %199
    %202 = vrot.lane.b32.xlu0 %v177, 120
    %v203 = vpop.permute.xlu0 %202
    %204 = vrot.lane.b32.xlu0 %v177, 112
    %v205 = vpop.permute.xlu0 %204
    %206 = vrot.lane.b32.xlu0 %v177, 104
    %v207 = vpop.permute.xlu0 %206
    %209 = vrot.lane.b32.xlu0 %v182, 120
    %v210 = vpop.permute.xlu0 %209
    %211 = vrot.lane.b32.xlu0 %v182, 112
    %v212 = vpop.permute.xlu0 %211
    %213 = vrot.lane.b32.xlu0 %v182, 104
    %v214 = vpop.permute.xlu0 %213
    %215 = vrot.lane.b32.xlu0 %v177, 96
    %v216 = vpop.permute.xlu0 %215
    %vm217 = vcmask 64512
    %v218 = vsel %vm217, %v185, 0
    %v220 = vsel %vm217, %v216, 0
    %222 = vmatprep.subr.mxu0 0.0
    %223 = vmatpush1.xpose.msra.mxu0 %v220
    %224 = vmatprep.subr.mxu0 0.0
    %225 = vmatpush1.xpose.msra.mxu0 0.0
    %226 = vmatprep.subr.mxu0 0.0
    %227 = vmatpush1.xpose.msra.mxu0 0.0
    %228 = vmatprep.subr.mxu0 0.0
    %229 = vmatpush1.xpose.msra.mxu0 0.0
    %230 = vmatprep.subr.mxu0 0.0
    %231 = vmatpush1.xpose.msra.mxu0 0.0
    %232 = vmatprep.subr.mxu0 0.0
    %233 = vmatpush1.xpose.msra.mxu0 0.0
    %234 = vmatprep.subr.mxu0 0.0
    %235 = vmatpush1.xpose.msra.mxu0 0.0
    %236 = vmatprep.subr.mxu0 0.0
    %237 = vmatpush1.xpose.msra.mxu0 0.0
    %238 = vmatprep.subr.mxu0 0.0
    %239 = vmatpush1.xpose.msra.mxu0 0.0
    %240 = vmatprep.subr.mxu0 0.0
    %241 = vmatpush1.xpose.msra.mxu0 0.0
    %242 = vmatprep.subr.mxu0 0.0
    %243 = vmatpush1.xpose.msra.mxu0 0.0
    %244 = vmatprep.subr.mxu0 0.0
    %245 = vmatpush1.xpose.msra.mxu0 0.0
    %246 = vmatprep.subr.mxu0 0.0
    %247 = vmatpush1.xpose.msra.mxu0 0.0
    %248 = vmatprep.subr.mxu0 0.0
    %249 = vmatpush1.xpose.msra.mxu0 0.0
    %250 = vmatprep.subr.mxu0 0.0
    %251 = vmatpush1.xpose.msra.mxu0 0.0
    %252 = vmatprep.subr.mxu0 0.0
    %253 = vmatpush1.xpose.msra.mxu0 0.0
    %254 = vmatprep.subr.mxu0 0.0
    %255 = vmatpush1.xpose.msra.mxu0 0.0
    %256 = vmatprep.subr.mxu0 0.0
    %257 = vmatpush1.xpose.msra.mxu0 0.0
    %258 = vmatprep.subr.mxu0 0.0
    %259 = vmatpush1.xpose.msra.mxu0 0.0
    %260 = vmatprep.subr.mxu0 0.0
    %261 = vmatpush1.xpose.msra.mxu0 0.0
    %262 = vmatprep.subr.mxu0 0.0
    %263 = vmatpush1.xpose.msra.mxu0 0.0
    %264 = vmatprep.subr.mxu0 0.0
    %265 = vmatpush1.xpose.msra.mxu0 0.0
    %266 = vmatprep.subr.mxu0 0.0
    %267 = vmatpush1.xpose.msra.mxu0 0.0
    %268 = vmatprep.subr.mxu0 0.0
    %269 = vmatpush1.xpose.msra.mxu0 0.0
    %270 = vmatprep.subr.mxu0 0.0
    %271 = vmatpush1.xpose.msra.mxu0 0.0
    %272 = vmatprep.subr.mxu0 0.0
    %273 = vmatpush1.xpose.msra.mxu0 0.0
    %274 = vmatprep.subr.mxu0 0.0
    %275 = vmatpush1.xpose.msra.mxu0 0.0
    %276 = vmatprep.subr.mxu0 0.0
    %277 = vmatpush1.xpose.msra.mxu0 0.0
    %278 = vmatprep.subr.mxu0 0.0
    %279 = vmatpush1.xpose.msra.mxu0 0.0
    %280 = vmatprep.subr.mxu0 0.0
    %281 = vmatpush1.xpose.msra.mxu0 0.0
    %282 = vmatprep.subr.mxu0 0.0
    %283 = vmatpush1.xpose.msra.mxu0 0.0
    %284 = vmatprep.subr.mxu0 0.0
    %285 = vmatpush1.xpose.msra.mxu0 0.0
    %286 = vmatprep.mubr.f32.mxu0 0.0
    %287 = vmatmul.mubr.f32.gmra.mrb[0].mxu0 %v218
    %v288 = vpop.f32.mrb[0].mxu0
    %v289 = vadd.f32 0.0, %v288
    %v290 = vpop.f32.mrb[0].mxu0
    %291 = vdwg.mxu0
    %292 = vrot.lane.b32.xlu0 %v203, 96
    %v293 = vpop.permute.xlu0 %292
    %v294 = vsel %vm217, %v189, 0
    %v296 = vsel %vm217, %v293, 0
    %298 = vmatprep.subr.mxu0 0.0
    %299 = vmatpush1.xpose.msra.mxu0 %v296
    %300 = vmatprep.subr.mxu0 0.0
    %301 = vmatpush1.xpose.msra.mxu0 0.0
    %302 = vmatprep.subr.mxu0 0.0
    %303 = vmatpush1.xpose.msra.mxu0 0.0
    %304 = vmatprep.subr.mxu0 0.0
    %305 = vmatpush1.xpose.msra.mxu0 0.0
    %306 = vmatprep.subr.mxu0 0.0
    %307 = vmatpush1.xpose.msra.mxu0 0.0
    %308 = vmatprep.subr.mxu0 0.0
    %309 = vmatpush1.xpose.msra.mxu0 0.0
    %310 = vmatprep.subr.mxu0 0.0
    %311 = vmatpush1.xpose.msra.mxu0 0.0
    %312 = vmatprep.subr.mxu0 0.0
    %313 = vmatpush1.xpose.msra.mxu0 0.0
    %314 = vmatprep.subr.mxu0 0.0
    %315 = vmatpush1.xpose.msra.mxu0 0.0
    %316 = vmatprep.subr.mxu0 0.0
    %317 = vmatpush1.xpose.msra.mxu0 0.0
    %318 = vmatprep.subr.mxu0 0.0
    %319 = vmatpush1.xpose.msra.mxu0 0.0
    %320 = vmatprep.subr.mxu0 0.0
    %321 = vmatpush1.xpose.msra.mxu0 0.0
    %322 = vmatprep.subr.mxu0 0.0
    %323 = vmatpush1.xpose.msra.mxu0 0.0
    %324 = vmatprep.subr.mxu0 0.0
    %325 = vmatpush1.xpose.msra.mxu0 0.0
    %326 = vmatprep.subr.mxu0 0.0
    %327 = vmatpush1.xpose.msra.mxu0 0.0
    %328 = vmatprep.subr.mxu0 0.0
    %329 = vmatpush1.xpose.msra.mxu0 0.0
    %330 = vmatprep.subr.mxu0 0.0
    %331 = vmatpush1.xpose.msra.mxu0 0.0
    %332 = vmatprep.subr.mxu0 0.0
    %333 = vmatpush1.xpose.msra.mxu0 0.0
    %334 = vmatprep.subr.mxu0 0.0
    %335 = vmatpush1.xpose.msra.mxu0 0.0
    %336 = vmatprep.subr.mxu0 0.0
    %337 = vmatpush1.xpose.msra.mxu0 0.0
    %338 = vmatprep.subr.mxu0 0.0
    %339 = vmatpush1.xpose.msra.mxu0 0.0
    %340 = vmatprep.subr.mxu0 0.0
    %341 = vmatpush1.xpose.msra.mxu0 0.0
    %342 = vmatprep.subr.mxu0 0.0
    %343 = vmatpush1.xpose.msra.mxu0 0.0
    %344 = vmatprep.subr.mxu0 0.0
    %345 = vmatpush1.xpose.msra.mxu0 0.0
    %346 = vmatprep.subr.mxu0 0.0
    %347 = vmatpush1.xpose.msra.mxu0 0.0
    %348 = vmatprep.subr.mxu0 0.0
    %349 = vmatpush1.xpose.msra.mxu0 0.0
    %350 = vmatprep.subr.mxu0 0.0
    %351 = vmatpush1.xpose.msra.mxu0 0.0
    %352 = vmatprep.subr.mxu0 0.0
    %353 = vmatpush1.xpose.msra.mxu0 0.0
    %354 = vmatprep.subr.mxu0 0.0
    %355 = vmatpush1.xpose.msra.mxu0 0.0
    %356 = vmatprep.subr.mxu0 0.0
    %357 = vmatpush1.xpose.msra.mxu0 0.0
    %358 = vmatprep.subr.mxu0 0.0
    %359 = vmatpush1.xpose.msra.mxu0 0.0
    %360 = vmatprep.subr.mxu0 0.0
    %361 = vmatpush1.xpose.msra.mxu0 0.0
    %362 = vmatprep.mubr.f32.mxu0 0.0
    %363 = vmatmul.mubr.f32.gmra.mrb[0].mxu0 %v294
    %v364 = vpop.f32.mrb[0].mxu0
    %v365 = vadd.f32 0.0, %v364
    %v366 = vpop.f32.mrb[0].mxu0
    %367 = vdwg.mxu0
    %368 = vrot.lane.b32.xlu0 %v205, 96
    %v369 = vpop.permute.xlu0 %368
    %v370 = vsel %vm217, %v191, 0
    %v372 = vsel %vm217, %v369, 0
    %374 = vmatprep.subr.mxu0 0.0
    %375 = vmatpush1.xpose.msra.mxu0 %v372
    %376 = vmatprep.subr.mxu0 0.0
    %377 = vmatpush1.xpose.msra.mxu0 0.0
    %378 = vmatprep.subr.mxu0 0.0
    %379 = vmatpush1.xpose.msra.mxu0 0.0
    %380 = vmatprep.subr.mxu0 0.0
    %381 = vmatpush1.xpose.msra.mxu0 0.0
    %382 = vmatprep.subr.mxu0 0.0
    %383 = vmatpush1.xpose.msra.mxu0 0.0
    %384 = vmatprep.subr.mxu0 0.0
    %385 = vmatpush1.xpose.msra.mxu0 0.0
    %386 = vmatprep.subr.mxu0 0.0
    %387 = vmatpush1.xpose.msra.mxu0 0.0
    %388 = vmatprep.subr.mxu0 0.0
    %389 = vmatpush1.xpose.msra.mxu0 0.0
    %390 = vmatprep.subr.mxu0 0.0
    %391 = vmatpush1.xpose.msra.mxu0 0.0
    %392 = vmatprep.subr.mxu0 0.0
    %393 = vmatpush1.xpose.msra.mxu0 0.0
    %394 = vmatprep.subr.mxu0 0.0
    %395 = vmatpush1.xpose.msra.mxu0 0.0
    %396 = vmatprep.subr.mxu0 0.0
    %397 = vmatpush1.xpose.msra.mxu0 0.0
    %398 = vmatprep.subr.mxu0 0.0
    %399 = vmatpush1.xpose.msra.mxu0 0.0
    %400 = vmatprep.subr.mxu0 0.0
    %401 = vmatpush1.xpose.msra.mxu0 0.0
    %402 = vmatprep.subr.mxu0 0.0
    %403 = vmatpush1.xpose.msra.mxu0 0.0
    %404 = vmatprep.subr.mxu0 0.0
    %405 = vmatpush1.xpose.msra.mxu0 0.0
    %406 = vmatprep.subr.mxu0 0.0
    %407 = vmatpush1.xpose.msra.mxu0 0.0
    %408 = vmatprep.subr.mxu0 0.0
    %409 = vmatpush1.xpose.msra.mxu0 0.0
    %410 = vmatprep.subr.mxu0 0.0
    %411 = vmatpush1.xpose.msra.mxu0 0.0
    %412 = vmatprep.subr.mxu0 0.0
    %413 = vmatpush1.xpose.msra.mxu0 0.0
    %414 = vmatprep.subr.mxu0 0.0
    %415 = vmatpush1.xpose.msra.mxu0 0.0
    %416 = vmatprep.subr.mxu0 0.0
    %417 = vmatpush1.xpose.msra.mxu0 0.0
    %418 = vmatprep.subr.mxu0 0.0
    %419 = vmatpush1.xpose.msra.mxu0 0.0
    %420 = vmatprep.subr.mxu0 0.0
    %421 = vmatpush1.xpose.msra.mxu0 0.0
    %422 = vmatprep.subr.mxu0 0.0
    %423 = vmatpush1.xpose.msra.mxu0 0.0
    %424 = vmatprep.subr.mxu0 0.0
    %425 = vmatpush1.xpose.msra.mxu0 0.0
    %426 = vmatprep.subr.mxu0 0.0
    %427 = vmatpush1.xpose.msra.mxu0 0.0
    %428 = vmatprep.subr.mxu0 0.0
    %429 = vmatpush1.xpose.msra.mxu0 0.0
    %430 = vmatprep.subr.mxu0 0.0
    %431 = vmatpush1.xpose.msra.mxu0 0.0
    %432 = vmatprep.subr.mxu0 0.0
    %433 = vmatpush1.xpose.msra.mxu0 0.0
    %434 = vmatprep.subr.mxu0 0.0
    %435 = vmatpush1.xpose.msra.mxu0 0.0
    %436 = vmatprep.subr.mxu0 0.0
    %437 = vmatpush1.xpose.msra.mxu0 0.0
    %438 = vmatprep.mubr.f32.mxu0 0.0
    %439 = vmatmul.mubr.f32.gmra.mrb[0].mxu0 %v370
    %v440 = vpop.f32.mrb[0].mxu0
    %v441 = vadd.f32 0.0, %v440
    %v442 = vpop.f32.mrb[0].mxu0
    %443 = vdwg.mxu0
    %444 = vrot.lane.b32.xlu0 %v207, 96
    %v445 = vpop.permute.xlu0 %444
    %v446 = vsel %vm217, %v193, 0
    %v448 = vsel %vm217, %v445, 0
    %450 = vmatprep.subr.mxu0 0.0
    %451 = vmatpush1.xpose.msra.mxu0 %v448
    %452 = vmatprep.subr.mxu0 0.0
    %453 = vmatpush1.xpose.msra.mxu0 0.0
    %454 = vmatprep.subr.mxu0 0.0
    %455 = vmatpush1.xpose.msra.mxu0 0.0
    %456 = vmatprep.subr.mxu0 0.0
    %457 = vmatpush1.xpose.msra.mxu0 0.0
    %458 = vmatprep.subr.mxu0 0.0
    %459 = vmatpush1.xpose.msra.mxu0 0.0
    %460 = vmatprep.subr.mxu0 0.0
    %461 = vmatpush1.xpose.msra.mxu0 0.0
    %462 = vmatprep.subr.mxu0 0.0
    %463 = vmatpush1.xpose.msra.mxu0 0.0
    %464 = vmatprep.subr.mxu0 0.0
    %465 = vmatpush1.xpose.msra.mxu0 0.0
    %466 = vmatprep.subr.mxu0 0.0
    %467 = vmatpush1.xpose.msra.mxu0 0.0
    %468 = vmatprep.subr.mxu0 0.0
    %469 = vmatpush1.xpose.msra.mxu0 0.0
    %470 = vmatprep.subr.mxu0 0.0
    %471 = vmatpush1.xpose.msra.mxu0 0.0
    %472 = vmatprep.subr.mxu0 0.0
    %473 = vmatpush1.xpose.msra.mxu0 0.0
    %474 = vmatprep.subr.mxu0 0.0
    %475 = vmatpush1.xpose.msra.mxu0 0.0
    %476 = vmatprep.subr.mxu0 0.0
    %477 = vmatpush1.xpose.msra.mxu0 0.0
    %478 = vmatprep.subr.mxu0 0.0
    %479 = vmatpush1.xpose.msra.mxu0 0.0
    %480 = vmatprep.subr.mxu0 0.0
    %481 = vmatpush1.xpose.msra.mxu0 0.0
    %482 = vmatprep.subr.mxu0 0.0
    %483 = vmatpush1.xpose.msra.mxu0 0.0
    %484 = vmatprep.subr.mxu0 0.0
    %485 = vmatpush1.xpose.msra.mxu0 0.0
    %486 = vmatprep.subr.mxu0 0.0
    %487 = vmatpush1.xpose.msra.mxu0 0.0
    %488 = vmatprep.subr.mxu0 0.0
    %489 = vmatpush1.xpose.msra.mxu0 0.0
    %490 = vmatprep.subr.mxu0 0.0
    %491 = vmatpush1.xpose.msra.mxu0 0.0
    %492 = vmatprep.subr.mxu0 0.0
    %493 = vmatpush1.xpose.msra.mxu0 0.0
    %494 = vmatprep.subr.mxu0 0.0
    %495 = vmatpush1.xpose.msra.mxu0 0.0
    %496 = vmatprep.subr.mxu0 0.0
    %497 = vmatpush1.xpose.msra.mxu0 0.0
    %498 = vmatprep.subr.mxu0 0.0
    %499 = vmatpush1.xpose.msra.mxu0 0.0
    %500 = vmatprep.subr.mxu0 0.0
    %501 = vmatpush1.xpose.msra.mxu0 0.0
    %502 = vmatprep.subr.mxu0 0.0
    %503 = vmatpush1.xpose.msra.mxu0 0.0
    %504 = vmatprep.subr.mxu0 0.0
    %505 = vmatpush1.xpose.msra.mxu0 0.0
    %506 = vmatprep.subr.mxu0 0.0
    %507 = vmatpush1.xpose.msra.mxu0 0.0
    %508 = vmatprep.subr.mxu0 0.0
    %509 = vmatpush1.xpose.msra.mxu0 0.0
    %510 = vmatprep.subr.mxu0 0.0
    %511 = vmatpush1.xpose.msra.mxu0 0.0
    %512 = vmatprep.subr.mxu0 0.0
    %513 = vmatpush1.xpose.msra.mxu0 0.0
    %514 = vmatprep.mubr.f32.mxu0 0.0
    %515 = vmatmul.mubr.f32.gmra.mrb[0].mxu0 %v446
    %v516 = vpop.f32.mrb[0].mxu0
    %v517 = vadd.f32 0.0, %v516
    %v518 = vpop.f32.mrb[0].mxu0
    %519 = vdwg.mxu0
    %520 = vrot.lane.b32.xlu0 %v182, 96
    %v521 = vpop.permute.xlu0 %520
    %v522 = vsel %vm217, %v186, 0
    %v524 = vsel %vm217, %v521, 0
    %526 = vmatprep.subr.mxu0 0.0
    %527 = vmatpush1.xpose.msra.mxu0 %v524
    %528 = vmatprep.subr.mxu0 0.0
    %529 = vmatpush1.xpose.msra.mxu0 0.0
    %530 = vmatprep.subr.mxu0 0.0
    %531 = vmatpush1.xpose.msra.mxu0 0.0
    %532 = vmatprep.subr.mxu0 0.0
    %533 = vmatpush1.xpose.msra.mxu0 0.0
    %534 = vmatprep.subr.mxu0 0.0
    %535 = vmatpush1.xpose.msra.mxu0 0.0
    %536 = vmatprep.subr.mxu0 0.0
    %537 = vmatpush1.xpose.msra.mxu0 0.0
    %538 = vmatprep.subr.mxu0 0.0
    %539 = vmatpush1.xpose.msra.mxu0 0.0
    %540 = vmatprep.subr.mxu0 0.0
    %541 = vmatpush1.xpose.msra.mxu0 0.0
    %542 = vmatprep.subr.mxu0 0.0
    %543 = vmatpush1.xpose.msra.mxu0 0.0
    %544 = vmatprep.subr.mxu0 0.0
    %545 = vmatpush1.xpose.msra.mxu0 0.0
    %546 = vmatprep.subr.mxu0 0.0
    %547 = vmatpush1.xpose.msra.mxu0 0.0
    %548 = vmatprep.subr.mxu0 0.0
    %549 = vmatpush1.xpose.msra.mxu0 0.0
    %550 = vmatprep.subr.mxu0 0.0
    %551 = vmatpush1.xpose.msra.mxu0 0.0
    %552 = vmatprep.subr.mxu0 0.0
    %553 = vmatpush1.xpose.msra.mxu0 0.0
    %554 = vmatprep.subr.mxu0 0.0
    %555 = vmatpush1.xpose.msra.mxu0 0.0
    %556 = vmatprep.subr.mxu0 0.0
    %557 = vmatpush1.xpose.msra.mxu0 0.0
    %558 = vmatprep.subr.mxu0 0.0
    %559 = vmatpush1.xpose.msra.mxu0 0.0
    %560 = vmatprep.subr.mxu0 0.0
    %561 = vmatpush1.xpose.msra.mxu0 0.0
    %562 = vmatprep.subr.mxu0 0.0
    %563 = vmatpush1.xpose.msra.mxu0 0.0
    %564 = vmatprep.subr.mxu0 0.0
    %565 = vmatpush1.xpose.msra.mxu0 0.0
    %566 = vmatprep.subr.mxu0 0.0
    %567 = vmatpush1.xpose.msra.mxu0 0.0
    %568 = vmatprep.subr.mxu0 0.0
    %569 = vmatpush1.xpose.msra.mxu0 0.0
    %570 = vmatprep.subr.mxu0 0.0
    %571 = vmatpush1.xpose.msra.mxu0 0.0
    %572 = vmatprep.subr.mxu0 0.0
    %573 = vmatpush1.xpose.msra.mxu0 0.0
    %574 = vmatprep.subr.mxu0 0.0
    %575 = vmatpush1.xpose.msra.mxu0 0.0
    %576 = vmatprep.subr.mxu0 0.0
    %577 = vmatpush1.xpose.msra.mxu0 0.0
    %578 = vmatprep.subr.mxu0 0.0
    %579 = vmatpush1.xpose.msra.mxu0 0.0
    %580 = vmatprep.subr.mxu0 0.0
    %581 = vmatpush1.xpose.msra.mxu0 0.0
    %582 = vmatprep.subr.mxu0 0.0
    %583 = vmatpush1.xpose.msra.mxu0 0.0
    %584 = vmatprep.subr.mxu0 0.0
    %585 = vmatpush1.xpose.msra.mxu0 0.0
    %586 = vmatprep.subr.mxu0 0.0
    %587 = vmatpush1.xpose.msra.mxu0 0.0
    %588 = vmatprep.subr.mxu0 0.0
    %589 = vmatpush1.xpose.msra.mxu0 0.0
    %590 = vmatprep.mubr.f32.mxu0 0.0
    %591 = vmatmul.mubr.f32.gmra.mrb[0].mxu0 %v522
    %v592 = vpop.f32.mrb[0].mxu0
    %v593 = vadd.f32 0.0, %v592
    %v594 = vpop.f32.mrb[0].mxu0
    %595 = vdwg.mxu0
    %596 = vrot.lane.b32.xlu0 %v210, 96
    %v597 = vpop.permute.xlu0 %596
    %v598 = vsel %vm217, %v196, 0
    %v600 = vsel %vm217, %v597, 0
    %602 = vmatprep.subr.mxu0 0.0
    %603 = vmatpush1.xpose.msra.mxu0 %v600
    %604 = vmatprep.subr.mxu0 0.0
    %605 = vmatpush1.xpose.msra.mxu0 0.0
    %606 = vmatprep.subr.mxu0 0.0
    %607 = vmatpush1.xpose.msra.mxu0 0.0
    %608 = vmatprep.subr.mxu0 0.0
    %609 = vmatpush1.xpose.msra.mxu0 0.0
    %610 = vmatprep.subr.mxu0 0.0
    %611 = vmatpush1.xpose.msra.mxu0 0.0
    %612 = vmatprep.subr.mxu0 0.0
    %613 = vmatpush1.xpose.msra.mxu0 0.0
    %614 = vmatprep.subr.mxu0 0.0
    %615 = vmatpush1.xpose.msra.mxu0 0.0
    %616 = vmatprep.subr.mxu0 0.0
    %617 = vmatpush1.xpose.msra.mxu0 0.0
    %618 = vmatprep.subr.mxu0 0.0
    %619 = vmatpush1.xpose.msra.mxu0 0.0
    %620 = vmatprep.subr.mxu0 0.0
    %621 = vmatpush1.xpose.msra.mxu0 0.0
    %622 = vmatprep.subr.mxu0 0.0
    %623 = vmatpush1.xpose.msra.mxu0 0.0
    %624 = vmatprep.subr.mxu0 0.0
    %625 = vmatpush1.xpose.msra.mxu0 0.0
    %626 = vmatprep.subr.mxu0 0.0
    %627 = vmatpush1.xpose.msra.mxu0 0.0
    %628 = vmatprep.subr.mxu0 0.0
    %629 = vmatpush1.xpose.msra.mxu0 0.0
    %630 = vmatprep.subr.mxu0 0.0
    %631 = vmatpush1.xpose.msra.mxu0 0.0
    %632 = vmatprep.subr.mxu0 0.0
    %633 = vmatpush1.xpose.msra.mxu0 0.0
    %634 = vmatprep.subr.mxu0 0.0
    %635 = vmatpush1.xpose.msra.mxu0 0.0
    %636 = vmatprep.subr.mxu0 0.0
    %637 = vmatpush1.xpose.msra.mxu0 0.0
    %638 = vmatprep.subr.mxu0 0.0
    %639 = vmatpush1.xpose.msra.mxu0 0.0
    %640 = vmatprep.subr.mxu0 0.0
    %641 = vmatpush1.xpose.msra.mxu0 0.0
    %642 = vmatprep.subr.mxu0 0.0
    %643 = vmatpush1.xpose.msra.mxu0 0.0
    %644 = vmatprep.subr.mxu0 0.0
    %645 = vmatpush1.xpose.msra.mxu0 0.0
    %646 = vmatprep.subr.mxu0 0.0
    %647 = vmatpush1.xpose.msra.mxu0 0.0
    %648 = vmatprep.subr.mxu0 0.0
    %649 = vmatpush1.xpose.msra.mxu0 0.0
    %650 = vmatprep.subr.mxu0 0.0
    %651 = vmatpush1.xpose.msra.mxu0 0.0
    %652 = vmatprep.subr.mxu0 0.0
    %653 = vmatpush1.xpose.msra.mxu0 0.0
    %654 = vmatprep.subr.mxu0 0.0
    %655 = vmatpush1.xpose.msra.mxu0 0.0
    %656 = vmatprep.subr.mxu0 0.0
    %657 = vmatpush1.xpose.msra.mxu0 0.0
    %658 = vmatprep.subr.mxu0 0.0
    %659 = vmatpush1.xpose.msra.mxu0 0.0
    %660 = vmatprep.subr.mxu0 0.0
    %661 = vmatpush1.xpose.msra.mxu0 0.0
    %662 = vmatprep.subr.mxu0 0.0
    %663 = vmatpush1.xpose.msra.mxu0 0.0
    %664 = vmatprep.subr.mxu0 0.0
    %665 = vmatpush1.xpose.msra.mxu0 0.0
    %666 = vmatprep.mubr.f32.mxu0 0.0
    %667 = vmatmul.mubr.f32.gmra.mrb[0].mxu0 %v598
    %v668 = vpop.f32.mrb[0].mxu0
    %v669 = vadd.f32 0.0, %v668
    %v670 = vpop.f32.mrb[0].mxu0
    %671 = vdwg.mxu0
    %672 = vrot.lane.b32.xlu0 %v212, 96
    %v673 = vpop.permute.xlu0 %672
    %v674 = vsel %vm217, %v198, 0
    %v676 = vsel %vm217, %v673, 0
    %678 = vmatprep.subr.mxu0 0.0
    %679 = vmatpush1.xpose.msra.mxu0 %v676
    %680 = vmatprep.subr.mxu0 0.0
    %681 = vmatpush1.xpose.msra.mxu0 0.0
    %682 = vmatprep.subr.mxu0 0.0
    %683 = vmatpush1.xpose.msra.mxu0 0.0
    %684 = vmatprep.subr.mxu0 0.0
    %685 = vmatpush1.xpose.msra.mxu0 0.0
    %686 = vmatprep.subr.mxu0 0.0
    %687 = vmatpush1.xpose.msra.mxu0 0.0
    %688 = vmatprep.subr.mxu0 0.0
    %689 = vmatpush1.xpose.msra.mxu0 0.0
    %690 = vmatprep.subr.mxu0 0.0
    %691 = vmatpush1.xpose.msra.mxu0 0.0
    %692 = vmatprep.subr.mxu0 0.0
    %693 = vmatpush1.xpose.msra.mxu0 0.0
    %694 = vmatprep.subr.mxu0 0.0
    %695 = vmatpush1.xpose.msra.mxu0 0.0
    %696 = vmatprep.subr.mxu0 0.0
    %697 = vmatpush1.xpose.msra.mxu0 0.0
    %698 = vmatprep.subr.mxu0 0.0
    %699 = vmatpush1.xpose.msra.mxu0 0.0
    %700 = vmatprep.subr.mxu0 0.0
    %701 = vmatpush1.xpose.msra.mxu0 0.0
    %702 = vmatprep.subr.mxu0 0.0
    %703 = vmatpush1.xpose.msra.mxu0 0.0
    %704 = vmatprep.subr.mxu0 0.0
    %705 = vmatpush1.xpose.msra.mxu0 0.0
    %706 = vmatprep.subr.mxu0 0.0
    %707 = vmatpush1.xpose.msra.mxu0 0.0
    %708 = vmatprep.subr.mxu0 0.0
    %709 = vmatpush1.xpose.msra.mxu0 0.0
    %710 = vmatprep.subr.mxu0 0.0
    %711 = vmatpush1.xpose.msra.mxu0 0.0
    %712 = vmatprep.subr.mxu0 0.0
    %713 = vmatpush1.xpose.msra.mxu0 0.0
    %714 = vmatprep.subr.mxu0 0.0
    %715 = vmatpush1.xpose.msra.mxu0 0.0
    %716 = vmatprep.subr.mxu0 0.0
    %717 = vmatpush1.xpose.msra.mxu0 0.0
    %718 = vmatprep.subr.mxu0 0.0
    %719 = vmatpush1.xpose.msra.mxu0 0.0
    %720 = vmatprep.subr.mxu0 0.0
    %721 = vmatpush1.xpose.msra.mxu0 0.0
    %722 = vmatprep.subr.mxu0 0.0
    %723 = vmatpush1.xpose.msra.mxu0 0.0
    %724 = vmatprep.subr.mxu0 0.0
    %725 = vmatpush1.xpose.msra.mxu0 0.0
    %726 = vmatprep.subr.mxu0 0.0
    %727 = vmatpush1.xpose.msra.mxu0 0.0
    %728 = vmatprep.subr.mxu0 0.0
    %729 = vmatpush1.xpose.msra.mxu0 0.0
    %730 = vmatprep.subr.mxu0 0.0
    %731 = vmatpush1.xpose.msra.mxu0 0.0
    %732 = vmatprep.subr.mxu0 0.0
    %733 = vmatpush1.xpose.msra.mxu0 0.0
    %734 = vmatprep.subr.mxu0 0.0
    %735 = vmatpush1.xpose.msra.mxu0 0.0
    %736 = vmatprep.subr.mxu0 0.0
    %737 = vmatpush1.xpose.msra.mxu0 0.0
    %738 = vmatprep.subr.mxu0 0.0
    %739 = vmatpush1.xpose.msra.mxu0 0.0
    %740 = vmatprep.subr.mxu0 0.0
    %741 = vmatpush1.xpose.msra.mxu0 0.0
    %742 = vmatprep.mubr.f32.mxu0 0.0
    %743 = vmatmul.mubr.f32.gmra.mrb[0].mxu0 %v674
    %v744 = vpop.f32.mrb[0].mxu0
    %v745 = vadd.f32 0.0, %v744
    %v746 = vpop.f32.mrb[0].mxu0
    %747 = vdwg.mxu0
    %748 = vrot.lane.b32.xlu0 %v214, 96
    %v749 = vpop.permute.xlu0 %748
    %v750 = vsel %vm217, %v200, 0
    %v752 = vsel %vm217, %v749, 0
    %754 = vmatprep.subr.mxu0 0.0
    %755 = vmatpush1.xpose.msra.mxu0 %v752
    %756 = vmatprep.subr.mxu0 0.0
    %757 = vmatpush1.xpose.msra.mxu0 0.0
    %758 = vmatprep.subr.mxu0 0.0
    %759 = vmatpush1.xpose.msra.mxu0 0.0
    %760 = vmatprep.subr.mxu0 0.0
    %761 = vmatpush1.xpose.msra.mxu0 0.0
    %762 = vmatprep.subr.mxu0 0.0
    %763 = vmatpush1.xpose.msra.mxu0 0.0
    %764 = vmatprep.subr.mxu0 0.0
    %765 = vmatpush1.xpose.msra.mxu0 0.0
    %766 = vmatprep.subr.mxu0 0.0
    %767 = vmatpush1.xpose.msra.mxu0 0.0
    %768 = vmatprep.subr.mxu0 0.0
    %769 = vmatpush1.xpose.msra.mxu0 0.0
    %770 = vmatprep.subr.mxu0 0.0
    %771 = vmatpush1.xpose.msra.mxu0 0.0
    %772 = vmatprep.subr.mxu0 0.0
    %773 = vmatpush1.xpose.msra.mxu0 0.0
    %774 = vmatprep.subr.mxu0 0.0
    %775 = vmatpush1.xpose.msra.mxu0 0.0
    %776 = vmatprep.subr.mxu0 0.0
    %777 = vmatpush1.xpose.msra.mxu0 0.0
    %778 = vmatprep.subr.mxu0 0.0
    %779 = vmatpush1.xpose.msra.mxu0 0.0
    %780 = vmatprep.subr.mxu0 0.0
    %781 = vmatpush1.xpose.msra.mxu0 0.0
    %782 = vmatprep.subr.mxu0 0.0
    %783 = vmatpush1.xpose.msra.mxu0 0.0
    %784 = vmatprep.subr.mxu0 0.0
    %785 = vmatpush1.xpose.msra.mxu0 0.0
    %786 = vmatprep.subr.mxu0 0.0
    %787 = vmatpush1.xpose.msra.mxu0 0.0
    %788 = vmatprep.subr.mxu0 0.0
    %789 = vmatpush1.xpose.msra.mxu0 0.0
    %790 = vmatprep.subr.mxu0 0.0
    %791 = vmatpush1.xpose.msra.mxu0 0.0
    %792 = vmatprep.subr.mxu0 0.0
    %793 = vmatpush1.xpose.msra.mxu0 0.0
    %794 = vmatprep.subr.mxu0 0.0
    %795 = vmatpush1.xpose.msra.mxu0 0.0
    %796 = vmatprep.subr.mxu0 0.0
    %797 = vmatpush1.xpose.msra.mxu0 0.0
    %798 = vmatprep.subr.mxu0 0.0
    %799 = vmatpush1.xpose.msra.mxu0 0.0
    %800 = vmatprep.subr.mxu0 0.0
    %801 = vmatpush1.xpose.msra.mxu0 0.0
    %802 = vmatprep.subr.mxu0 0.0
    %803 = vmatpush1.xpose.msra.mxu0 0.0
    %804 = vmatprep.subr.mxu0 0.0
    %805 = vmatpush1.xpose.msra.mxu0 0.0
    %806 = vmatprep.subr.mxu0 0.0
    %807 = vmatpush1.xpose.msra.mxu0 0.0
    %808 = vmatprep.subr.mxu0 0.0
    %809 = vmatpush1.xpose.msra.mxu0 0.0
    %810 = vmatprep.subr.mxu0 0.0
    %811 = vmatpush1.xpose.msra.mxu0 0.0
    %812 = vmatprep.subr.mxu0 0.0
    %813 = vmatpush1.xpose.msra.mxu0 0.0
    %814 = vmatprep.subr.mxu0 0.0
    %815 = vmatpush1.xpose.msra.mxu0 0.0
    %816 = vmatprep.subr.mxu0 0.0
    %817 = vmatpush1.xpose.msra.mxu0 0.0
    %818 = vmatprep.mubr.f32.mxu0 0.0
    %819 = vmatmul.mubr.f32.gmra.mrb[0].mxu0 %v750
    %v820 = vpop.f32.mrb[0].mxu0
    %v821 = vadd.f32 0.0, %v820
    %v822 = vpop.f32.mrb[0].mxu0
    %823 = vdwg.mxu0
    %v824 = vsel %vm217, %v289, -inf
    %825 = vmax.xlane.f32.xlu0 %v824
    %v826 = vpop.xlane.xlu0 %825
    %v827 = vsel %vm217, %v365, -inf
    %828 = vmax.xlane.f32.xlu0 %v827
    %v829 = vpop.xlane.xlu0 %828
    %v830 = vsel %vm217, %v441, -inf
    %831 = vmax.xlane.f32.xlu0 %v830
    %v832 = vpop.xlane.xlu0 %831
    %v833 = vsel %vm217, %v517, -inf
    %834 = vmax.xlane.f32.xlu0 %v833
    %v835 = vpop.xlane.xlu0 %834
    %v836 = vsel %vm217, %v593, -inf
    %837 = vmax.xlane.f32.xlu0 %v836
    %v838 = vpop.xlane.xlu0 %837
    %v839 = vsel %vm217, %v669, -inf
    %840 = vmax.xlane.f32.xlu0 %v839
    %v841 = vpop.xlane.xlu0 %840
    %v842 = vsel %vm217, %v745, -inf
    %843 = vmax.xlane.f32.xlu0 %v842
    %v844 = vpop.xlane.xlu0 %843
    %v845 = vsel %vm217, %v821, -inf
    %846 = vmax.xlane.f32.xlu0 %v845
    %v847 = vpop.xlane.xlu0 %846
    %v848 = vsub.f32 %v289, %v826
    %v849 = vsub.f32 %v365, %v829
    %v850 = vsub.f32 %v441, %v832
    %v851 = vsub.f32 %v517, %v835
    %v852 = vsub.f32 %v593, %v838
    %v853 = vsub.f32 %v669, %v841
    %v854 = vsub.f32 %v745, %v844
    %v855 = vsub.f32 %v821, %v847
    %v856 = vmul.f32 %v848, 1.442695
    %v857 = vpow.pop %v856
    %v858 = vmul.f32 %v849, 1.442695
    %v859 = vpow.pop %v858
    %v860 = vmul.f32 %v850, 1.442695
    %v861 = vpow.pop %v860
    %v862 = vmul.f32 %v851, 1.442695
    %v863 = vpow.pop %v862
    %v864 = vmul.f32 %v852, 1.442695
    %v865 = vpow.pop %v864
    %v866 = vmul.f32 %v853, 1.442695
    %v867 = vpow.pop %v866
    %v868 = vmul.f32 %v854, 1.442695
    %v869 = vpow.pop %v868
    %v870 = vmul.f32 %v855, 1.442695
    %v871 = vpow.pop %v870
    %v872 = vsel %vm217, %v857, 0.0
    %873 = vadd.xlane.f32.xlu0 %v872
    %v874 = vpop.xlane.xlu0 %873
    %v875 = vsel %vm217, %v859, 0.0
    %876 = vadd.xlane.f32.xlu0 %v875
    %v877 = vpop.xlane.xlu0 %876
    %v878 = vsel %vm217, %v861, 0.0
    %879 = vadd.xlane.f32.xlu0 %v878
    %v880 = vpop.xlane.xlu0 %879
    %v881 = vsel %vm217, %v863, 0.0
    %882 = vadd.xlane.f32.xlu0 %v881
    %v883 = vpop.xlane.xlu0 %882
    %v884 = vsel %vm217, %v865, 0.0
    %885 = vadd.xlane.f32.xlu0 %v884
    %v886 = vpop.xlane.xlu0 %885
    %v887 = vsel %vm217, %v867, 0.0
    %888 = vadd.xlane.f32.xlu0 %v887
    %v889 = vpop.xlane.xlu0 %888
    %v890 = vsel %vm217, %v869, 0.0
    %891 = vadd.xlane.f32.xlu0 %v890
    %v892 = vpop.xlane.xlu0 %891
    %v893 = vsel %vm217, %v871, 0.0
    %894 = vadd.xlane.f32.xlu0 %v893
    %v895 = vpop.xlane.xlu0 %894
    %v896 = vrcp.pop %v874
    %v897 = vrcp.pop %v877
    %v898 = vrcp.pop %v880
    %v899 = vrcp.pop %v883
    %v900 = vrcp.pop %v886
    %v901 = vrcp.pop %v889
    %v902 = vrcp.pop %v892
    %v903 = vrcp.pop %v895
    %v904 = vmul.f32 %v857, %v896
    %v905 = vmul.f32 %v859, %v897
    %v906 = vmul.f32 %v861, %v898
    %v907 = vmul.f32 %v863, %v899
    %v908 = vmul.f32 %v865, %v900
    %v909 = vmul.f32 %v867, %v901
    %v910 = vmul.f32 %v869, %v902
    %v911 = vmul.f32 %v871, %v903
    %912 = vrot.lane.b32.xlu0 %v177, 64
    %v913 = vpop.permute.xlu0 %912
    %v916 = vsel %vm217, %v904, 0
    %918 = vmatprep.subr.mxu0 0.0
    %919 = vmatpush1.msra.mxu0 %v913
    %920 = vmatprep.subr.mxu0 0.0
    %921 = vmatpush1.msra.mxu0 0.0
    %922 = vmatprep.subr.mxu0 0.0
    %923 = vmatpush1.msra.mxu0 0.0
    %924 = vmatprep.subr.mxu0 0.0
    %925 = vmatpush1.msra.mxu0 0.0
    %926 = vmatprep.subr.mxu0 0.0
    %927 = vmatpush1.msra.mxu0 0.0
    %928 = vmatprep.subr.mxu0 0.0
    %929 = vmatpush1.msra.mxu0 0.0
    %930 = vmatprep.subr.mxu0 0.0
    %931 = vmatpush1.msra.mxu0 0.0
    %932 = vmatprep.subr.mxu0 0.0
    %933 = vmatpush1.msra.mxu0 0.0
    %934 = vmatprep.subr.mxu0 0.0
    %935 = vmatpush1.msra.mxu0 0.0
    %936 = vmatprep.subr.mxu0 0.0
    %937 = vmatpush1.msra.mxu0 0.0
    %938 = vmatprep.subr.mxu0 0.0
    %939 = vmatpush1.msra.mxu0 0.0
    %940 = vmatprep.subr.mxu0 0.0
    %941 = vmatpush1.msra.mxu0 0.0
    %942 = vmatprep.subr.mxu0 0.0
    %943 = vmatpush1.msra.mxu0 0.0
    %944 = vmatprep.subr.mxu0 0.0
    %945 = vmatpush1.msra.mxu0 0.0
    %946 = vmatprep.subr.mxu0 0.0
    %947 = vmatpush1.msra.mxu0 0.0
    %948 = vmatprep.subr.mxu0 0.0
    %949 = vmatpush1.msra.mxu0 0.0
    %950 = vmatprep.subr.mxu0 0.0
    %951 = vmatpush1.msra.mxu0 0.0
    %952 = vmatprep.subr.mxu0 0.0
    %953 = vmatpush1.msra.mxu0 0.0
    %954 = vmatprep.subr.mxu0 0.0
    %955 = vmatpush1.msra.mxu0 0.0
    %956 = vmatprep.subr.mxu0 0.0
    %957 = vmatpush1.msra.mxu0 0.0
    %958 = vmatprep.subr.mxu0 0.0
    %959 = vmatpush1.msra.mxu0 0.0
    %960 = vmatprep.subr.mxu0 0.0
    %961 = vmatpush1.msra.mxu0 0.0
    %962 = vmatprep.subr.mxu0 0.0
    %963 = vmatpush1.msra.mxu0 0.0
    %964 = vmatprep.subr.mxu0 0.0
    %965 = vmatpush1.msra.mxu0 0.0
    %966 = vmatprep.subr.mxu0 0.0
    %967 = vmatpush1.msra.mxu0 0.0
    %968 = vmatprep.subr.mxu0 0.0
    %969 = vmatpush1.msra.mxu0 0.0
    %970 = vmatprep.subr.mxu0 0.0
    %971 = vmatpush1.msra.mxu0 0.0
    %972 = vmatprep.subr.mxu0 0.0
    %973 = vmatpush1.msra.mxu0 0.0
    %974 = vmatprep.subr.mxu0 0.0
    %975 = vmatpush1.msra.mxu0 0.0
    %976 = vmatprep.subr.mxu0 0.0
    %977 = vmatpush1.msra.mxu0 0.0
    %978 = vmatprep.subr.mxu0 0.0
    %979 = vmatpush1.msra.mxu0 0.0
    %980 = vmatprep.subr.mxu0 0.0
    %981 = vmatpush1.msra.mxu0 0.0
    %982 = vmatprep.mubr.f32.mxu0 0.0
    %983 = vmatmul.mubr.f32.gmra.mrb[0].mxu0 %v916
    %v984 = vpop.f32.mrb[0].mxu0
    %v985 = vadd.f32 0.0, %v984
    %v986 = vpop.f32.mrb[0].mxu0
    %987 = vdwg.mxu0
    %988 = vrot.lane.b32.xlu0 %v203, 64
    %v989 = vpop.permute.xlu0 %988
    %v992 = vsel %vm217, %v905, 0
    %994 = vmatprep.subr.mxu0 0.0
    %995 = vmatpush1.msra.mxu0 %v989
    %996 = vmatprep.subr.mxu0 0.0
    %997 = vmatpush1.msra.mxu0 0.0
    %998 = vmatprep.subr.mxu0 0.0
    %999 = vmatpush1.msra.mxu0 0.0
    %1000 = vmatprep.subr.mxu0 0.0
    %1001 = vmatpush1.msra.mxu0 0.0
    %1002 = vmatprep.subr.mxu0 0.0
    %1003 = vmatpush1.msra.mxu0 0.0
    %1004 = vmatprep.subr.mxu0 0.0
    %1005 = vmatpush1.msra.mxu0 0.0
    %1006 = vmatprep.subr.mxu0 0.0
    %1007 = vmatpush1.msra.mxu0 0.0
    %1008 = vmatprep.subr.mxu0 0.0
    %1009 = vmatpush1.msra.mxu0 0.0
    %1010 = vmatprep.subr.mxu0 0.0
    %1011 = vmatpush1.msra.mxu0 0.0
    %1012 = vmatprep.subr.mxu0 0.0
    %1013 = vmatpush1.msra.mxu0 0.0
    %1014 = vmatprep.subr.mxu0 0.0
    %1015 = vmatpush1.msra.mxu0 0.0
    %1016 = vmatprep.subr.mxu0 0.0
    %1017 = vmatpush1.msra.mxu0 0.0
    %1018 = vmatprep.subr.mxu0 0.0
    %1019 = vmatpush1.msra.mxu0 0.0
    %1020 = vmatprep.subr.mxu0 0.0
    %1021 = vmatpush1.msra.mxu0 0.0
    %1022 = vmatprep.subr.mxu0 0.0
    %1023 = vmatpush1.msra.mxu0 0.0
    %1024 = vmatprep.subr.mxu0 0.0
    %1025 = vmatpush1.msra.mxu0 0.0
    %1026 = vmatprep.subr.mxu0 0.0
    %1027 = vmatpush1.msra.mxu0 0.0
    %1028 = vmatprep.subr.mxu0 0.0
    %1029 = vmatpush1.msra.mxu0 0.0
    %1030 = vmatprep.subr.mxu0 0.0
    %1031 = vmatpush1.msra.mxu0 0.0
    %1032 = vmatprep.subr.mxu0 0.0
    %1033 = vmatpush1.msra.mxu0 0.0
    %1034 = vmatprep.subr.mxu0 0.0
    %1035 = vmatpush1.msra.mxu0 0.0
    %1036 = vmatprep.subr.mxu0 0.0
    %1037 = vmatpush1.msra.mxu0 0.0
    %1038 = vmatprep.subr.mxu0 0.0
    %1039 = vmatpush1.msra.mxu0 0.0
    %1040 = vmatprep.subr.mxu0 0.0
    %1041 = vmatpush1.msra.mxu0 0.0
    %1042 = vmatprep.subr.mxu0 0.0
    %1043 = vmatpush1.msra.mxu0 0.0
    %1044 = vmatprep.subr.mxu0 0.0
    %1045 = vmatpush1.msra.mxu0 0.0
    %1046 = vmatprep.subr.mxu0 0.0
    %1047 = vmatpush1.msra.mxu0 0.0
    %1048 = vmatprep.subr.mxu0 0.0
    %1049 = vmatpush1.msra.mxu0 0.0
    %1050 = vmatprep.subr.mxu0 0.0
    %1051 = vmatpush1.msra.mxu0 0.0
    %1052 = vmatprep.subr.mxu0 0.0
    %1053 = vmatpush1.msra.mxu0 0.0
    %1054 = vmatprep.subr.mxu0 0.0
    %1055 = vmatpush1.msra.mxu0 0.0
    %1056 = vmatprep.subr.mxu0 0.0
    %1057 = vmatpush1.msra.mxu0 0.0
    %1058 = vmatprep.mubr.f32.mxu0 0.0
    %1059 = vmatmul.mubr.f32.gmra.mrb[0].mxu0 %v992
    %v1060 = vpop.f32.mrb[0].mxu0
    %v1061 = vadd.f32 0.0, %v1060
    %v1062 = vpop.f32.mrb[0].mxu0
    %1063 = vdwg.mxu0
    %1064 = vrot.lane.b32.xlu0 %v205, 64
    %v1065 = vpop.permute.xlu0 %1064
    %v1068 = vsel %vm217, %v906, 0
    %1070 = vmatprep.subr.mxu0 0.0
    %1071 = vmatpush1.msra.mxu0 %v1065
    %1072 = vmatprep.subr.mxu0 0.0
    %1073 = vmatpush1.msra.mxu0 0.0
    %1074 = vmatprep.subr.mxu0 0.0
    %1075 = vmatpush1.msra.mxu0 0.0
    %1076 = vmatprep.subr.mxu0 0.0
    %1077 = vmatpush1.msra.mxu0 0.0
    %1078 = vmatprep.subr.mxu0 0.0
    %1079 = vmatpush1.msra.mxu0 0.0
    %1080 = vmatprep.subr.mxu0 0.0
    %1081 = vmatpush1.msra.mxu0 0.0
    %1082 = vmatprep.subr.mxu0 0.0
    %1083 = vmatpush1.msra.mxu0 0.0
    %1084 = vmatprep.subr.mxu0 0.0
    %1085 = vmatpush1.msra.mxu0 0.0
    %1086 = vmatprep.subr.mxu0 0.0
    %1087 = vmatpush1.msra.mxu0 0.0
    %1088 = vmatprep.subr.mxu0 0.0
    %1089 = vmatpush1.msra.mxu0 0.0
    %1090 = vmatprep.subr.mxu0 0.0
    %1091 = vmatpush1.msra.mxu0 0.0
    %1092 = vmatprep.subr.mxu0 0.0
    %1093 = vmatpush1.msra.mxu0 0.0
    %1094 = vmatprep.subr.mxu0 0.0
    %1095 = vmatpush1.msra.mxu0 0.0
    %1096 = vmatprep.subr.mxu0 0.0
    %1097 = vmatpush1.msra.mxu0 0.0
    %1098 = vmatprep.subr.mxu0 0.0
    %1099 = vmatpush1.msra.mxu0 0.0
    %1100 = vmatprep.subr.mxu0 0.0
    %1101 = vmatpush1.msra.mxu0 0.0
    %1102 = vmatprep.subr.mxu0 0.0
    %1103 = vmatpush1.msra.mxu0 0.0
    %1104 = vmatprep.subr.mxu0 0.0
    %1105 = vmatpush1.msra.mxu0 0.0
    %1106 = vmatprep.subr.mxu0 0.0
    %1107 = vmatpush1.msra.mxu0 0.0
    %1108 = vmatprep.subr.mxu0 0.0
    %1109 = vmatpush1.msra.mxu0 0.0
    %1110 = vmatprep.subr.mxu0 0.0
    %1111 = vmatpush1.msra.mxu0 0.0
    %1112 = vmatprep.subr.mxu0 0.0
    %1113 = vmatpush1.msra.mxu0 0.0
    %1114 = vmatprep.subr.mxu0 0.0
    %1115 = vmatpush1.msra.mxu0 0.0
    %1116 = vmatprep.subr.mxu0 0.0
    %1117 = vmatpush1.msra.mxu0 0.0
    %1118 = vmatprep.subr.mxu0 0.0
    %1119 = vmatpush1.msra.mxu0 0.0
    %1120 = vmatprep.subr.mxu0 0.0
    %1121 = vmatpush1.msra.mxu0 0.0
    %1122 = vmatprep.subr.mxu0 0.0
    %1123 = vmatpush1.msra.mxu0 0.0
    %1124 = vmatprep.subr.mxu0 0.0
    %1125 = vmatpush1.msra.mxu0 0.0
    %1126 = vmatprep.subr.mxu0 0.0
    %1127 = vmatpush1.msra.mxu0 0.0
    %1128 = vmatprep.subr.mxu0 0.0
    %1129 = vmatpush1.msra.mxu0 0.0
    %1130 = vmatprep.subr.mxu0 0.0
    %1131 = vmatpush1.msra.mxu0 0.0
    %1132 = vmatprep.subr.mxu0 0.0
    %1133 = vmatpush1.msra.mxu0 0.0
    %1134 = vmatprep.mubr.f32.mxu0 0.0
    %1135 = vmatmul.mubr.f32.gmra.mrb[0].mxu0 %v1068
    %v1136 = vpop.f32.mrb[0].mxu0
    %v1137 = vadd.f32 0.0, %v1136
    %v1138 = vpop.f32.mrb[0].mxu0
    %1139 = vdwg.mxu0
    %1140 = vrot.lane.b32.xlu0 %v207, 64
    %v1141 = vpop.permute.xlu0 %1140
    %v1144 = vsel %vm217, %v907, 0
    %1146 = vmatprep.subr.mxu0 0.0
    %1147 = vmatpush1.msra.mxu0 %v1141
    %1148 = vmatprep.subr.mxu0 0.0
    %1149 = vmatpush1.msra.mxu0 0.0
    %1150 = vmatprep.subr.mxu0 0.0
    %1151 = vmatpush1.msra.mxu0 0.0
    %1152 = vmatprep.subr.mxu0 0.0
    %1153 = vmatpush1.msra.mxu0 0.0
    %1154 = vmatprep.subr.mxu0 0.0
    %1155 = vmatpush1.msra.mxu0 0.0
    %1156 = vmatprep.subr.mxu0 0.0
    %1157 = vmatpush1.msra.mxu0 0.0
    %1158 = vmatprep.subr.mxu0 0.0
    %1159 = vmatpush1.msra.mxu0 0.0
    %1160 = vmatprep.subr.mxu0 0.0
    %1161 = vmatpush1.msra.mxu0 0.0
    %1162 = vmatprep.subr.mxu0 0.0
    %1163 = vmatpush1.msra.mxu0 0.0
    %1164 = vmatprep.subr.mxu0 0.0
    %1165 = vmatpush1.msra.mxu0 0.0
    %1166 = vmatprep.subr.mxu0 0.0
    %1167 = vmatpush1.msra.mxu0 0.0
    %1168 = vmatprep.subr.mxu0 0.0
    %1169 = vmatpush1.msra.mxu0 0.0
    %1170 = vmatprep.subr.mxu0 0.0
    %1171 = vmatpush1.msra.mxu0 0.0
    %1172 = vmatprep.subr.mxu0 0.0
    %1173 = vmatpush1.msra.mxu0 0.0
    %1174 = vmatprep.subr.mxu0 0.0
    %1175 = vmatpush1.msra.mxu0 0.0
    %1176 = vmatprep.subr.mxu0 0.0
    %1177 = vmatpush1.msra.mxu0 0.0
    %1178 = vmatprep.subr.mxu0 0.0
    %1179 = vmatpush1.msra.mxu0 0.0
    %1180 = vmatprep.subr.mxu0 0.0
    %1181 = vmatpush1.msra.mxu0 0.0
    %1182 = vmatprep.subr.mxu0 0.0
    %1183 = vmatpush1.msra.mxu0 0.0
    %1184 = vmatprep.subr.mxu0 0.0
    %1185 = vmatpush1.msra.mxu0 0.0
    %1186 = vmatprep.subr.mxu0 0.0
    %1187 = vmatpush1.msra.mxu0 0.0
    %1188 = vmatprep.subr.mxu0 0.0
    %1189 = vmatpush1.msra.mxu0 0.0
    %1190 = vmatprep.subr.mxu0 0.0
    %1191 = vmatpush1.msra.mxu0 0.0
    %1192 = vmatprep.subr.mxu0 0.0
    %1193 = vmatpush1.msra.mxu0 0.0
    %1194 = vmatprep.subr.mxu0 0.0
    %1195 = vmatpush1.msra.mxu0 0.0
    %1196 = vmatprep.subr.mxu0 0.0
    %1197 = vmatpush1.msra.mxu0 0.0
    %1198 = vmatprep.subr.mxu0 0.0
    %1199 = vmatpush1.msra.mxu0 0.0
    %1200 = vmatprep.subr.mxu0 0.0
    %1201 = vmatpush1.msra.mxu0 0.0
    %1202 = vmatprep.subr.mxu0 0.0
    %1203 = vmatpush1.msra.mxu0 0.0
    %1204 = vmatprep.subr.mxu0 0.0
    %1205 = vmatpush1.msra.mxu0 0.0
    %1206 = vmatprep.subr.mxu0 0.0
    %1207 = vmatpush1.msra.mxu0 0.0
    %1208 = vmatprep.subr.mxu0 0.0
    %1209 = vmatpush1.msra.mxu0 0.0
    %1210 = vmatprep.mubr.f32.mxu0 0.0
    %1211 = vmatmul.mubr.f32.gmra.mrb[0].mxu0 %v1144
    %v1212 = vpop.f32.mrb[0].mxu0
    %v1213 = vadd.f32 0.0, %v1212
    %v1214 = vpop.f32.mrb[0].mxu0
    %1215 = vdwg.mxu0
    %1216 = vrot.lane.b32.xlu0 %v182, 64
    %v1217 = vpop.permute.xlu0 %1216
    %v1220 = vsel %vm217, %v908, 0
    %1222 = vmatprep.subr.mxu0 0.0
    %1223 = vmatpush1.msra.mxu0 %v1217
    %1224 = vmatprep.subr.mxu0 0.0
    %1225 = vmatpush1.msra.mxu0 0.0
    %1226 = vmatprep.subr.mxu0 0.0
    %1227 = vmatpush1.msra.mxu0 0.0
    %1228 = vmatprep.subr.mxu0 0.0
    %1229 = vmatpush1.msra.mxu0 0.0
    %1230 = vmatprep.subr.mxu0 0.0
    %1231 = vmatpush1.msra.mxu0 0.0
    %1232 = vmatprep.subr.mxu0 0.0
    %1233 = vmatpush1.msra.mxu0 0.0
    %1234 = vmatprep.subr.mxu0 0.0
    %1235 = vmatpush1.msra.mxu0 0.0
    %1236 = vmatprep.subr.mxu0 0.0
    %1237 = vmatpush1.msra.mxu0 0.0
    %1238 = vmatprep.subr.mxu0 0.0
    %1239 = vmatpush1.msra.mxu0 0.0
    %1240 = vmatprep.subr.mxu0 0.0
    %1241 = vmatpush1.msra.mxu0 0.0
    %1242 = vmatprep.subr.mxu0 0.0
    %1243 = vmatpush1.msra.mxu0 0.0
    %1244 = vmatprep.subr.mxu0 0.0
    %1245 = vmatpush1.msra.mxu0 0.0
    %1246 = vmatprep.subr.mxu0 0.0
    %1247 = vmatpush1.msra.mxu0 0.0
    %1248 = vmatprep.subr.mxu0 0.0
    %1249 = vmatpush1.msra.mxu0 0.0
    %1250 = vmatprep.subr.mxu0 0.0
    %1251 = vmatpush1.msra.mxu0 0.0
    %1252 = vmatprep.subr.mxu0 0.0
    %1253 = vmatpush1.msra.mxu0 0.0
    %1254 = vmatprep.subr.mxu0 0.0
    %1255 = vmatpush1.msra.mxu0 0.0
    %1256 = vmatprep.subr.mxu0 0.0
    %1257 = vmatpush1.msra.mxu0 0.0
    %1258 = vmatprep.subr.mxu0 0.0
    %1259 = vmatpush1.msra.mxu0 0.0
    %1260 = vmatprep.subr.mxu0 0.0
    %1261 = vmatpush1.msra.mxu0 0.0
    %1262 = vmatprep.subr.mxu0 0.0
    %1263 = vmatpush1.msra.mxu0 0.0
    %1264 = vmatprep.subr.mxu0 0.0
    %1265 = vmatpush1.msra.mxu0 0.0
    %1266 = vmatprep.subr.mxu0 0.0
    %1267 = vmatpush1.msra.mxu0 0.0
    %1268 = vmatprep.subr.mxu0 0.0
    %1269 = vmatpush1.msra.mxu0 0.0
    %1270 = vmatprep.subr.mxu0 0.0
    %1271 = vmatpush1.msra.mxu0 0.0
    %1272 = vmatprep.subr.mxu0 0.0
    %1273 = vmatpush1.msra.mxu0 0.0
    %1274 = vmatprep.subr.mxu0 0.0
    %1275 = vmatpush1.msra.mxu0 0.0
    %1276 = vmatprep.subr.mxu0 0.0
    %1277 = vmatpush1.msra.mxu0 0.0
    %1278 = vmatprep.subr.mxu0 0.0
    %1279 = vmatpush1.msra.mxu0 0.0
    %1280 = vmatprep.subr.mxu0 0.0
    %1281 = vmatpush1.msra.mxu0 0.0
    %1282 = vmatprep.subr.mxu0 0.0
    %1283 = vmatpush1.msra.mxu0 0.0
    %1284 = vmatprep.subr.mxu0 0.0
    %1285 = vmatpush1.msra.mxu0 0.0
    %1286 = vmatprep.mubr.f32.mxu0 0.0
    %1287 = vmatmul.mubr.f32.gmra.mrb[0].mxu0 %v1220
    %v1288 = vpop.f32.mrb[0].mxu0
    %v1289 = vadd.f32 0.0, %v1288
    %v1290 = vpop.f32.mrb[0].mxu0
    %1291 = vdwg.mxu0
    %1292 = vrot.lane.b32.xlu0 %v210, 64
    %v1293 = vpop.permute.xlu0 %1292
    %v1296 = vsel %vm217, %v909, 0
    %1298 = vmatprep.subr.mxu0 0.0
    %1299 = vmatpush1.msra.mxu0 %v1293
    %1300 = vmatprep.subr.mxu0 0.0
    %1301 = vmatpush1.msra.mxu0 0.0
    %1302 = vmatprep.subr.mxu0 0.0
    %1303 = vmatpush1.msra.mxu0 0.0
    %1304 = vmatprep.subr.mxu0 0.0
    %1305 = vmatpush1.msra.mxu0 0.0
    %1306 = vmatprep.subr.mxu0 0.0
    %1307 = vmatpush1.msra.mxu0 0.0
    %1308 = vmatprep.subr.mxu0 0.0
    %1309 = vmatpush1.msra.mxu0 0.0
    %1310 = vmatprep.subr.mxu0 0.0
    %1311 = vmatpush1.msra.mxu0 0.0
    %1312 = vmatprep.subr.mxu0 0.0
    %1313 = vmatpush1.msra.mxu0 0.0
    %1314 = vmatprep.subr.mxu0 0.0
    %1315 = vmatpush1.msra.mxu0 0.0
    %1316 = vmatprep.subr.mxu0 0.0
    %1317 = vmatpush1.msra.mxu0 0.0
    %1318 = vmatprep.subr.mxu0 0.0
    %1319 = vmatpush1.msra.mxu0 0.0
    %1320 = vmatprep.subr.mxu0 0.0
    %1321 = vmatpush1.msra.mxu0 0.0
    %1322 = vmatprep.subr.mxu0 0.0
    %1323 = vmatpush1.msra.mxu0 0.0
    %1324 = vmatprep.subr.mxu0 0.0
    %1325 = vmatpush1.msra.mxu0 0.0
    %1326 = vmatprep.subr.mxu0 0.0
    %1327 = vmatpush1.msra.mxu0 0.0
    %1328 = vmatprep.subr.mxu0 0.0
    %1329 = vmatpush1.msra.mxu0 0.0
    %1330 = vmatprep.subr.mxu0 0.0
    %1331 = vmatpush1.msra.mxu0 0.0
    %1332 = vmatprep.subr.mxu0 0.0
    %1333 = vmatpush1.msra.mxu0 0.0
    %1334 = vmatprep.subr.mxu0 0.0
    %1335 = vmatpush1.msra.mxu0 0.0
    %1336 = vmatprep.subr.mxu0 0.0
    %1337 = vmatpush1.msra.mxu0 0.0
    %1338 = vmatprep.subr.mxu0 0.0
    %1339 = vmatpush1.msra.mxu0 0.0
    %1340 = vmatprep.subr.mxu0 0.0
    %1341 = vmatpush1.msra.mxu0 0.0
    %1342 = vmatprep.subr.mxu0 0.0
    %1343 = vmatpush1.msra.mxu0 0.0
    %1344 = vmatprep.subr.mxu0 0.0
    %1345 = vmatpush1.msra.mxu0 0.0
    %1346 = vmatprep.subr.mxu0 0.0
    %1347 = vmatpush1.msra.mxu0 0.0
    %1348 = vmatprep.subr.mxu0 0.0
    %1349 = vmatpush1.msra.mxu0 0.0
    %1350 = vmatprep.subr.mxu0 0.0
    %1351 = vmatpush1.msra.mxu0 0.0
    %1352 = vmatprep.subr.mxu0 0.0
    %1353 = vmatpush1.msra.mxu0 0.0
    %1354 = vmatprep.subr.mxu0 0.0
    %1355 = vmatpush1.msra.mxu0 0.0
    %1356 = vmatprep.subr.mxu0 0.0
    %1357 = vmatpush1.msra.mxu0 0.0
    %1358 = vmatprep.subr.mxu0 0.0
    %1359 = vmatpush1.msra.mxu0 0.0
    %1360 = vmatprep.subr.mxu0 0.0
    %1361 = vmatpush1.msra.mxu0 0.0
    %1362 = vmatprep.mubr.f32.mxu0 0.0
    %1363 = vmatmul.mubr.f32.gmra.mrb[0].mxu0 %v1296
    %v1364 = vpop.f32.mrb[0].mxu0
    %v1365 = vadd.f32 0.0, %v1364
    %v1366 = vpop.f32.mrb[0].mxu0
    %1367 = vdwg.mxu0
    %1368 = vrot.lane.b32.xlu0 %v212, 64
    %v1369 = vpop.permute.xlu0 %1368
    %v1372 = vsel %vm217, %v910, 0
    %1374 = vmatprep.subr.mxu0 0.0
    %1375 = vmatpush1.msra.mxu0 %v1369
    %1376 = vmatprep.subr.mxu0 0.0
    %1377 = vmatpush1.msra.mxu0 0.0
    %1378 = vmatprep.subr.mxu0 0.0
    %1379 = vmatpush1.msra.mxu0 0.0
    %1380 = vmatprep.subr.mxu0 0.0
    %1381 = vmatpush1.msra.mxu0 0.0
    %1382 = vmatprep.subr.mxu0 0.0
    %1383 = vmatpush1.msra.mxu0 0.0
    %1384 = vmatprep.subr.mxu0 0.0
    %1385 = vmatpush1.msra.mxu0 0.0
    %1386 = vmatprep.subr.mxu0 0.0
    %1387 = vmatpush1.msra.mxu0 0.0
    %1388 = vmatprep.subr.mxu0 0.0
    %1389 = vmatpush1.msra.mxu0 0.0
    %1390 = vmatprep.subr.mxu0 0.0
    %1391 = vmatpush1.msra.mxu0 0.0
    %1392 = vmatprep.subr.mxu0 0.0
    %1393 = vmatpush1.msra.mxu0 0.0
    %1394 = vmatprep.subr.mxu0 0.0
    %1395 = vmatpush1.msra.mxu0 0.0
    %1396 = vmatprep.subr.mxu0 0.0
    %1397 = vmatpush1.msra.mxu0 0.0
    %1398 = vmatprep.subr.mxu0 0.0
    %1399 = vmatpush1.msra.mxu0 0.0
    %1400 = vmatprep.subr.mxu0 0.0
    %1401 = vmatpush1.msra.mxu0 0.0
    %1402 = vmatprep.subr.mxu0 0.0
    %1403 = vmatpush1.msra.mxu0 0.0
    %1404 = vmatprep.subr.mxu0 0.0
    %1405 = vmatpush1.msra.mxu0 0.0
    %1406 = vmatprep.subr.mxu0 0.0
    %1407 = vmatpush1.msra.mxu0 0.0
    %1408 = vmatprep.subr.mxu0 0.0
    %1409 = vmatpush1.msra.mxu0 0.0
    %1410 = vmatprep.subr.mxu0 0.0
    %1411 = vmatpush1.msra.mxu0 0.0
    %1412 = vmatprep.subr.mxu0 0.0
    %1413 = vmatpush1.msra.mxu0 0.0
    %1414 = vmatprep.subr.mxu0 0.0
    %1415 = vmatpush1.msra.mxu0 0.0
    %1416 = vmatprep.subr.mxu0 0.0
    %1417 = vmatpush1.msra.mxu0 0.0
    %1418 = vmatprep.subr.mxu0 0.0
    %1419 = vmatpush1.msra.mxu0 0.0
    %1420 = vmatprep.subr.mxu0 0.0
    %1421 = vmatpush1.msra.mxu0 0.0
    %1422 = vmatprep.subr.mxu0 0.0
    %1423 = vmatpush1.msra.mxu0 0.0
    %1424 = vmatprep.subr.mxu0 0.0
    %1425 = vmatpush1.msra.mxu0 0.0
    %1426 = vmatprep.subr.mxu0 0.0
    %1427 = vmatpush1.msra.mxu0 0.0
    %1428 = vmatprep.subr.mxu0 0.0
    %1429 = vmatpush1.msra.mxu0 0.0
    %1430 = vmatprep.subr.mxu0 0.0
    %1431 = vmatpush1.msra.mxu0 0.0
    %1432 = vmatprep.subr.mxu0 0.0
    %1433 = vmatpush1.msra.mxu0 0.0
    %1434 = vmatprep.subr.mxu0 0.0
    %1435 = vmatpush1.msra.mxu0 0.0
    %1436 = vmatprep.subr.mxu0 0.0
    %1437 = vmatpush1.msra.mxu0 0.0
    %1438 = vmatprep.mubr.f32.mxu0 0.0
    %1439 = vmatmul.mubr.f32.gmra.mrb[0].mxu0 %v1372
    %v1440 = vpop.f32.mrb[0].mxu0
    %v1441 = vadd.f32 0.0, %v1440
    %v1442 = vpop.f32.mrb[0].mxu0
    %1443 = vdwg.mxu0
    %1444 = vrot.lane.b32.xlu0 %v214, 64
    %v1445 = vpop.permute.xlu0 %1444
    %v1448 = vsel %vm217, %v911, 0
    %1450 = vmatprep.subr.mxu0 0.0
    %1451 = vmatpush1.msra.mxu0 %v1445
    %1452 = vmatprep.subr.mxu0 0.0
    %1453 = vmatpush1.msra.mxu0 0.0
    %1454 = vmatprep.subr.mxu0 0.0
    %1455 = vmatpush1.msra.mxu0 0.0
    %1456 = vmatprep.subr.mxu0 0.0
    %1457 = vmatpush1.msra.mxu0 0.0
    %1458 = vmatprep.subr.mxu0 0.0
    %1459 = vmatpush1.msra.mxu0 0.0
    %1460 = vmatprep.subr.mxu0 0.0
    %1461 = vmatpush1.msra.mxu0 0.0
    %1462 = vmatprep.subr.mxu0 0.0
    %1463 = vmatpush1.msra.mxu0 0.0
    %1464 = vmatprep.subr.mxu0 0.0
    %1465 = vmatpush1.msra.mxu0 0.0
    %1466 = vmatprep.subr.mxu0 0.0
    %1467 = vmatpush1.msra.mxu0 0.0
    %1468 = vmatprep.subr.mxu0 0.0
    %1469 = vmatpush1.msra.mxu0 0.0
    %1470 = vmatprep.subr.mxu0 0.0
    %1471 = vmatpush1.msra.mxu0 0.0
    %1472 = vmatprep.subr.mxu0 0.0
    %1473 = vmatpush1.msra.mxu0 0.0
    %1474 = vmatprep.subr.mxu0 0.0
    %1475 = vmatpush1.msra.mxu0 0.0
    %1476 = vmatprep.subr.mxu0 0.0
    %1477 = vmatpush1.msra.mxu0 0.0
    %1478 = vmatprep.subr.mxu0 0.0
    %1479 = vmatpush1.msra.mxu0 0.0
    %1480 = vmatprep.subr.mxu0 0.0
    %1481 = vmatpush1.msra.mxu0 0.0
    %1482 = vmatprep.subr.mxu0 0.0
    %1483 = vmatpush1.msra.mxu0 0.0
    %1484 = vmatprep.subr.mxu0 0.0
    %1485 = vmatpush1.msra.mxu0 0.0
    %1486 = vmatprep.subr.mxu0 0.0
    %1487 = vmatpush1.msra.mxu0 0.0
    %1488 = vmatprep.subr.mxu0 0.0
    %1489 = vmatpush1.msra.mxu0 0.0
    %1490 = vmatprep.subr.mxu0 0.0
    %1491 = vmatpush1.msra.mxu0 0.0
    %1492 = vmatprep.subr.mxu0 0.0
    %1493 = vmatpush1.msra.mxu0 0.0
    %1494 = vmatprep.subr.mxu0 0.0
    %1495 = vmatpush1.msra.mxu0 0.0
    %1496 = vmatprep.subr.mxu0 0.0
    %1497 = vmatpush1.msra.mxu0 0.0
    %1498 = vmatprep.subr.mxu0 0.0
    %1499 = vmatpush1.msra.mxu0 0.0
    %1500 = vmatprep.subr.mxu0 0.0
    %1501 = vmatpush1.msra.mxu0 0.0
    %1502 = vmatprep.subr.mxu0 0.0
    %1503 = vmatpush1.msra.mxu0 0.0
    %1504 = vmatprep.subr.mxu0 0.0
    %1505 = vmatpush1.msra.mxu0 0.0
    %1506 = vmatprep.subr.mxu0 0.0
    %1507 = vmatpush1.msra.mxu0 0.0
    %1508 = vmatprep.subr.mxu0 0.0
    %1509 = vmatpush1.msra.mxu0 0.0
    %1510 = vmatprep.subr.mxu0 0.0
    %1511 = vmatpush1.msra.mxu0 0.0
    %1512 = vmatprep.subr.mxu0 0.0
    %1513 = vmatpush1.msra.mxu0 0.0
    %1514 = vmatprep.mubr.f32.mxu0 0.0
    %1515 = vmatmul.mubr.f32.gmra.mrb[0].mxu0 %v1448
    %v1516 = vpop.f32.mrb[0].mxu0
    %v1517 = vadd.f32 0.0, %v1516
    %v1518 = vpop.f32.mrb[0].mxu0
    %1519 = vdwg.mxu0
    %1521 = vrot.lane.b32.xlu0 %v1061, 8
    %v1522 = vpop.permute.xlu0 %1521
    %1525 = vrot.lane.b32.xlu0 %v1137, 16
    %v1526 = vpop.permute.xlu0 %1525
    %1529 = vrot.lane.b32.xlu0 %v1213, 24
    %v1530 = vpop.permute.xlu0 %1529
    %v1532 = vsel %vm217, %v985, %v1522
    %vm1533 = vcmask 130048
    %v1534 = vsel %vm1533, %v1532, %v1526
    %vm1535 = vcmask 195584
    %v1536 = vsel %vm1535, %v1534, %v1530
    %1538 = vrot.lane.b32.xlu0 %v1365, 8
    %v1539 = vpop.permute.xlu0 %1538
    %1542 = vrot.lane.b32.xlu0 %v1441, 16
    %v1543 = vpop.permute.xlu0 %1542
    %1546 = vrot.lane.b32.xlu0 %v1517, 24
    %v1547 = vpop.permute.xlu0 %1546
    %v1549 = vsel %vm217, %v1289, %v1539
    %v1550 = vsel %vm1533, %v1549, %v1543
    %v1551 = vsel %vm1535, %v1550, %v1547
    %v1552 = vld [vmem:[%s5] sm:$0xff]
    %v1553 = vld [vmem:[%s5 + $0x8] sm:$0xff]
    %v1554 = vld [vmem:[%s5 + $0x10] sm:$0xff]
    %v1555 = vld [vmem:[%s5 + $0x18] sm:$0xff]
    %v1556 = vld [vmem:[%s6] sm:$0x1]
    %v1558 = vlaneseq
    %v1559 = vshrl.u32 %v1558, 7
    %v1560 = vsub.s32 0, %v1559
    %v1561 = vrot.slane %v1556, %v1560
    %v1564 = vsel %vm49, %v1536, 0
    %v1567 = vsel %vm49, %v1551, 0
    %1569 = vmatprep.subr.mxu0 0.0
    %1570 = vmatpush1.msra.mxu0 %v1552
    %1571 = vmatprep.subr.mxu0 0.0
    %1572 = vmatpush1.msra.mxu0 %v1553
    %1573 = vmatprep.subr.mxu0 0.0
    %1574 = vmatpush1.msra.mxu0 %v1554
    %1575 = vmatprep.subr.mxu0 0.0
    %1576 = vmatpush1.msra.mxu0 %v1555
    %1577 = vmatprep.subr.mxu0 0.0
    %1578 = vmatpush1.msra.mxu0 0.0
    %1579 = vmatprep.subr.mxu0 0.0
    %1580 = vmatpush1.msra.mxu0 0.0
    %1581 = vmatprep.subr.mxu0 0.0
    %1582 = vmatpush1.msra.mxu0 0.0
    %1583 = vmatprep.subr.mxu0 0.0
    %1584 = vmatpush1.msra.mxu0 0.0
    %1585 = vmatprep.subr.mxu0 0.0
    %1586 = vmatpush1.msra.mxu0 0.0
    %1587 = vmatprep.subr.mxu0 0.0
    %1588 = vmatpush1.msra.mxu0 0.0
    %1589 = vmatprep.subr.mxu0 0.0
    %1590 = vmatpush1.msra.mxu0 0.0
    %1591 = vmatprep.subr.mxu0 0.0
    %1592 = vmatpush1.msra.mxu0 0.0
    %1593 = vmatprep.subr.mxu0 0.0
    %1594 = vmatpush1.msra.mxu0 0.0
    %1595 = vmatprep.subr.mxu0 0.0
    %1596 = vmatpush1.msra.mxu0 0.0
    %1597 = vmatprep.subr.mxu0 0.0
    %1598 = vmatpush1.msra.mxu0 0.0
    %1599 = vmatprep.subr.mxu0 0.0
    %1600 = vmatpush1.msra.mxu0 0.0
    %1601 = vmatprep.subr.mxu0 0.0
    %1602 = vmatpush1.msra.mxu0 0.0
    %1603 = vmatprep.subr.mxu0 0.0
    %1604 = vmatpush1.msra.mxu0 0.0
    %1605 = vmatprep.subr.mxu0 0.0
    %1606 = vmatpush1.msra.mxu0 0.0
    %1607 = vmatprep.subr.mxu0 0.0
    %1608 = vmatpush1.msra.mxu0 0.0
    %1609 = vmatprep.subr.mxu0 0.0
    %1610 = vmatpush1.msra.mxu0 0.0
    %1611 = vmatprep.subr.mxu0 0.0
    %1612 = vmatpush1.msra.mxu0 0.0
    %1613 = vmatprep.subr.mxu0 0.0
    %1614 = vmatpush1.msra.mxu0 0.0
    %1615 = vmatprep.subr.mxu0 0.0
    %1616 = vmatpush1.msra.mxu0 0.0
    %1617 = vmatprep.subr.mxu0 0.0
    %1618 = vmatpush1.msra.mxu0 0.0
    %1619 = vmatprep.subr.mxu0 0.0
    %1620 = vmatpush1.msra.mxu0 0.0
    %1621 = vmatprep.subr.mxu0 0.0
    %1622 = vmatpush1.msra.mxu0 0.0
    %1623 = vmatprep.subr.mxu0 0.0
    %1624 = vmatpush1.msra.mxu0 0.0
    %1625 = vmatprep.subr.mxu0 0.0
    %1626 = vmatpush1.msra.mxu0 0.0
    %1627 = vmatprep.subr.mxu0 0.0
    %1628 = vmatpush1.msra.mxu0 0.0
    %1629 = vmatprep.subr.mxu0 0.0
    %1630 = vmatpush1.msra.mxu0 0.0
    %1631 = vmatprep.subr.mxu0 0.0
    %1632 = vmatpush1.msra.mxu0 0.0
    %1633 = vmatprep.mubr.f32.mxu0 0.0
    %1634 = vmatmul.mubr.f32.gmra.mrb[0].mxu0 %v1564
    %v1635 = vpop.f32.mrb[0].mxu0
    %v1636 = vadd.f32 %v1561, %v1635
    %v1637 = vpop.f32.mrb[0].mxu0
    %1638 = vmatprep.mubr.f32.mxu0 0.0
    %1639 = vmatmul.mubr.f32.gmra.mrb[0].mxu0 %v1567
    %v1640 = vpop.f32.mrb[0].mxu0
    %v1641 = vadd.f32 %v1561, %v1640
    %v1642 = vpop.f32.mrb[0].mxu0
    %1643 = vdwg.mxu0
    %v1644 = vadd.f32 %v45, %v1636
    %v1645 = vadd.f32 %v46, %v1641
    %v1646 = vld [vmem:[%s7] sm:$0x1]
    %v1647 = vld [vmem:[%s8] sm:$0x1]
    %v1648 = vsel %vm49, %v1644, 0.0
    %1649 = vadd.xlane.f32.xlu0 %v1648
    %v1650 = vpop.xlane.xlu0 %1649
    %v1651 = vsel %vm49, %v1645, 0.0
    %1652 = vadd.xlane.f32.xlu0 %v1651
    %v1653 = vpop.xlane.xlu0 %1652
    %v1654 = vmul.f32 %v1650, %v56
    %v1655 = vmul.f32 %v1653, %v56
    %v1656 = vsub.f32 %v1644, %v1654
    %v1657 = vsub.f32 %v1645, %v1655
    %v1658 = vmul.f32 %v1656, %v1656
    %v1659 = vmul.f32 %v1657, %v1657
    %v1660 = vsel %vm49, %v1658, 0.0
    %1661 = vadd.xlane.f32.xlu0 %v1660
    %v1662 = vpop.xlane.xlu0 %1661
    %v1663 = vsel %vm49, %v1659, 0.0
    %1664 = vadd.xlane.f32.xlu0 %v1663
    %v1665 = vpop.xlane.xlu0 %1664
    %v1666 = vmul.f32 %v1662, %v56
    %v1667 = vmul.f32 %v1665, %v56
    %v1668 = vadd.f32 %v1666, 1e-05
    %v1669 = vadd.f32 %v1667, 1e-05
    %v1670 = vrsqrt.pop %v1668
    %v1671 = vrsqrt.pop %v1669
    %v1672 = vmul.f32 %v1656, %v1670
    %v1673 = vmul.f32 %v1657, %v1671
    %v1675 = vlaneseq
    %v1676 = vshrl.u32 %v1675, 7
    %v1677 = vsub.s32 0, %v1676
    %v1678 = vrot.slane %v1646, %v1677
    %v1680 = vmul.f32 %v1672, %v1678
    %v1681 = vmul.f32 %v1673, %v1678
    %v1683 = vlaneseq
    %v1684 = vshrl.u32 %v1683, 7
    %v1685 = vsub.s32 0, %v1684
    %v1686 = vrot.slane %v1647, %v1685
    %v1688 = vadd.f32 %v1680, %v1686
    %v1689 = vadd.f32 %v1681, %v1686
    %v1690 = vld [vmem:[%s9] sm:$0xff]
    %v1691 = vld [vmem:[%s9 + $0x8] sm:$0xff]
    %v1692 = vld [vmem:[%s9 + $0x10] sm:$0xff]
    %v1693 = vld [vmem:[%s9 + $0x18] sm:$0xff]
    %v1694 = vld [vmem:[%s10] sm:$0x1]
    %v1696 = vlaneseq
    %v1697 = vshrl.u32 %v1696, 7
    %v1698 = vsub.s32 0, %v1697
    %v1699 = vrot.slane %v1694, %v1698
    %v1702 = vsel %vm49, %v1688, 0
    %v1705 = vsel %vm49, %v1689, 0
    %1707 = vmatprep.subr.mxu0 0.0
    %1708 = vmatpush1.msra.mxu0 %v1690
    %1709 = vmatprep.subr.mxu0 0.0
    %1710 = vmatpush1.msra.mxu0 %v1691
    %1711 = vmatprep.subr.mxu0 0.0
    %1712 = vmatpush1.msra.mxu0 %v1692
    %1713 = vmatprep.subr.mxu0 0.0
    %1714 = vmatpush1.msra.mxu0 %v1693
    %1715 = vmatprep.subr.mxu0 0.0
    %1716 = vmatpush1.msra.mxu0 0.0
    %1717 = vmatprep.subr.mxu0 0.0
    %1718 = vmatpush1.msra.mxu0 0.0
    %1719 = vmatprep.subr.mxu0 0.0
    %1720 = vmatpush1.msra.mxu0 0.0
    %1721 = vmatprep.subr.mxu0 0.0
    %1722 = vmatpush1.msra.mxu0 0.0
    %1723 = vmatprep.subr.mxu0 0.0
    %1724 = vmatpush1.msra.mxu0 0.0
    %1725 = vmatprep.subr.mxu0 0.0
    %1726 = vmatpush1.msra.mxu0 0.0
    %1727 = vmatprep.subr.mxu0 0.0
    %1728 = vmatpush1.msra.mxu0 0.0
    %1729 = vmatprep.subr.mxu0 0.0
    %1730 = vmatpush1.msra.mxu0 0.0
    %1731 = vmatprep.subr.mxu0 0.0
    %1732 = vmatpush1.msra.mxu0 0.0
    %1733 = vmatprep.subr.mxu0 0.0
    %1734 = vmatpush1.msra.mxu0 0.0
    %1735 = vmatprep.subr.mxu0 0.0
    %1736 = vmatpush1.msra.mxu0 0.0
    %1737 = vmatprep.subr.mxu0 0.0
    %1738 = vmatpush1.msra.mxu0 0.0
    %1739 = vmatprep.subr.mxu0 0.0
    %1740 = vmatpush1.msra.mxu0 0.0
    %1741 = vmatprep.subr.mxu0 0.0
    %1742 = vmatpush1.msra.mxu0 0.0
    %1743 = vmatprep.subr.mxu0 0.0
    %1744 = vmatpush1.msra.mxu0 0.0
    %1745 = vmatprep.subr.mxu0 0.0
    %1746 = vmatpush1.msra.mxu0 0.0
    %1747 = vmatprep.subr.mxu0 0.0
    %1748 = vmatpush1.msra.mxu0 0.0
    %1749 = vmatprep.subr.mxu0 0.0
    %1750 = vmatpush1.msra.mxu0 0.0
    %1751 = vmatprep.subr.mxu0 0.0
    %1752 = vmatpush1.msra.mxu0 0.0
    %1753 = vmatprep.subr.mxu0 0.0
    %1754 = vmatpush1.msra.mxu0 0.0
    %1755 = vmatprep.subr.mxu0 0.0
    %1756 = vmatpush1.msra.mxu0 0.0
    %1757 = vmatprep.subr.mxu0 0.0
    %1758 = vmatpush1.msra.mxu0 0.0
    %1759 = vmatprep.subr.mxu0 0.0
    %1760 = vmatpush1.msra.mxu0 0.0
    %1761 = vmatprep.subr.mxu0 0.0
    %1762 = vmatpush1.msra.mxu0 0.0
    %1763 = vmatprep.subr.mxu0 0.0
    %1764 = vmatpush1.msra.mxu0 0.0
    %1765 = vmatprep.subr.mxu0 0.0
    %1766 = vmatpush1.msra.mxu0 0.0
    %1767 = vmatprep.subr.mxu0 0.0
    %1768 = vmatpush1.msra.mxu0 0.0
    %1769 = vmatprep.subr.mxu0 0.0
    %1770 = vmatpush1.msra.mxu0 0.0
    %1771 = vmatprep.mubr.f32.mxu0 0.0
    %1772 = vmatmul.mubr.f32.gmra.mrb[0].mxu0 %v1702
    %v1773 = vpop.f32.mrb[0].mxu0
    %v1774 = vadd.f32 %v1699, %v1773
    %v1775 = vpop.f32.mrb[0].mxu0
    %1776 = vmatprep.mubr.f32.mxu0 0.0
    %1777 = vmatmul.mubr.f32.gmra.mrb[0].mxu0 %v1705
    %v1778 = vpop.f32.mrb[0].mxu0
    %v1779 = vadd.f32 %v1699, %v1778
    %v1780 = vpop.f32.mrb[0].mxu0
    %1781 = vdwg.mxu0
    %v1782 = vmul.f32 %v1774, 0.5
    %v1783 = vmul.f32 %v1779, 0.5
    %v1784 = vmul.f32 %v1774, 0.70710677
    %v1785 = vmul.f32 %v1779, 0.70710677
    %v1786 = verf.f32.pop %v1784
    %v1787 = verf.f32.pop %v1785
    %v1788 = vadd.f32 %v1786, 1.0
    %v1789 = vadd.f32 %v1787, 1.0
    %v1790 = vmul.f32 %v1782, %v1788
    %v1791 = vmul.f32 %v1783, %v1789
    %v1792 = vld [vmem:[%s11] sm:$0xff]
    %v1793 = vld [vmem:[%s11 + $0x8] sm:$0xff]
    %v1794 = vld [vmem:[%s11 + $0x10] sm:$0xff]
    %v1795 = vld [vmem:[%s11 + $0x18] sm:$0xff]
    %v1796 = vld [vmem:[%s11 + $0x20] sm:$0xff]
    %v1797 = vld [vmem:[%s11 + $0x28] sm:$0xff]
    %v1798 = vld [vmem:[%s11 + $0x30] sm:$0xff]
    %v1799 = vld [vmem:[%s11 + $0x38] sm:$0xff]
    %v1800 = vld [vmem:[%s11 + $0x40] sm:$0xff]
    %v1801 = vld [vmem:[%s11 + $0x48] sm:$0xff]
    %v1802 = vld [vmem:[%s11 + $0x50] sm:$0xff]
    %v1803 = vld [vmem:[%s11 + $0x58] sm:$0xff]
    %v1804 = vld [vmem:[%s11 + $0x60] sm:$0xff]
    %v1805 = vld [vmem:[%s11 + $0x68] sm:$0xff]
    %v1806 = vld [vmem:[%s11 + $0x70] sm:$0xff]
    %v1807 = vld [vmem:[%s11 + $0x78] sm:$0xff]
    %v1808 = vld [vmem:[%s12] sm:$0x1]
    %v1810 = vlaneseq
    %v1811 = vshrl.u32 %v1810, 7
    %v1812 = vsub.s32 0, %v1811
    %v1813 = vrot.slane %v1808, %v1812
    %1815 = vmatprep.subr.mxu0 0.0
    %1816 = vmatpush1.msra.mxu0 %v1792
    %1817 = vmatprep.subr.mxu0 0.0
    %1818 = vmatpush1.msra.mxu0 %v1793
    %1819 = vmatprep.subr.mxu0 0.0
    %1820 = vmatpush1.msra.mxu0 %v1794
    %1821 = vmatprep.subr.mxu0 0.0
    %1822 = vmatpush1.msra.mxu0 %v1795
    %1823 = vmatprep.subr.mxu0 0.0
    %1824 = vmatpush1.msra.mxu0 %v1796
    %1825 = vmatprep.subr.mxu0 0.0
    %1826 = vmatpush1.msra.mxu0 %v1797
    %1827 = vmatprep.subr.mxu0 0.0
    %1828 = vmatpush1.msra.mxu0 %v1798
    %1829 = vmatprep.subr.mxu0 0.0
    %1830 = vmatpush1.msra.mxu0 %v1799
    %1831 = vmatprep.subr.mxu0 0.0
    %1832 = vmatpush1.msra.mxu0 %v1800
    %1833 = vmatprep.subr.mxu0 0.0
    %1834 = vmatpush1.msra.mxu0 %v1801
    %1835 = vmatprep.subr.mxu0 0.0
    %1836 = vmatpush1.msra.mxu0 %v1802
    %1837 = vmatprep.subr.mxu0 0.0
    %1838 = vmatpush1.msra.mxu0 %v1803
    %1839 = vmatprep.subr.mxu0 0.0
    %1840 = vmatpush1.msra.mxu0 %v1804
    %1841 = vmatprep.subr.mxu0 0.0
    %1842 = vmatpush1.msra.mxu0 %v1805
    %1843 = vmatprep.subr.mxu0 0.0
    %1844 = vmatpush1.msra.mxu0 %v1806
    %1845 = vmatprep.subr.mxu0 0.0
    %1846 = vmatpush1.msra.mxu0 %v1807
    %1847 = vmatprep.subr.mxu0 0.0
    %1848 = vmatpush1.msra.mxu0 0.0
    %1849 = vmatprep.subr.mxu0 0.0
    %1850 = vmatpush1.msra.mxu0 0.0
    %1851 = vmatprep.subr.mxu0 0.0
    %1852 = vmatpush1.msra.mxu0 0.0
    %1853 = vmatprep.subr.mxu0 0.0
    %1854 = vmatpush1.msra.mxu0 0.0
    %1855 = vmatprep.subr.mxu0 0.0
    %1856 = vmatpush1.msra.mxu0 0.0
    %1857 = vmatprep.subr.mxu0 0.0
    %1858 = vmatpush1.msra.mxu0 0.0
    %1859 = vmatprep.subr.mxu0 0.0
    %1860 = vmatpush1.msra.mxu0 0.0
    %1861 = vmatprep.subr.mxu0 0.0
    %1862 = vmatpush1.msra.mxu0 0.0
    %1863 = vmatprep.subr.mxu0 0.0
    %1864 = vmatpush1.msra.mxu0 0.0
    %1865 = vmatprep.subr.mxu0 0.0
    %1866 = vmatpush1.msra.mxu0 0.0
    %1867 = vmatprep.subr.mxu0 0.0
    %1868 = vmatpush1.msra.mxu0 0.0
    %1869 = vmatprep.subr.mxu0 0.0
    %1870 = vmatpush1.msra.mxu0 0.0
    %1871 = vmatprep.subr.mxu0 0.0
    %1872 = vmatpush1.msra.mxu0 0.0
    %1873 = vmatprep.subr.mxu0 0.0
    %1874 = vmatpush1.msra.mxu0 0.0
    %1875 = vmatprep.subr.mxu0 0.0
    %1876 = vmatpush1.msra.mxu0 0.0
    %1877 = vmatprep.subr.mxu0 0.0
    %1878 = vmatpush1.msra.mxu0 0.0
    %1879 = vmatprep.mubr.f32.mxu0 0.0
    %1880 = vmatmul.mubr.f32.gmra.mrb[0].mxu0 %v1790
    %v1881 = vpop.f32.mrb[0].mxu0
    %v1882 = vadd.f32 %v1813, %v1881
    %v1883 = vpop.f32.mrb[0].mxu0
    %1884 = vmatprep.mubr.f32.mxu0 0.0
    %1885 = vmatmul.mubr.f32.gmra.mrb[0].mxu0 %v1791
    %v1886 = vpop.f32.mrb[0].mxu0
    %v1887 = vadd.f32 %v1813, %v1886
    %v1888 = vpop.f32.mrb[0].mxu0
    %1889 = vdwg.mxu0
    %v1890 = vadd.f32 %v1644, %v1882
    %v1891 = vadd.f32 %v1645, %v1887
    %1892 = vst.msk [vmem:[#allocation2] sm:$0xff] %vm49, %v1890
    %1893 = vst.msk [vmem:[#allocation2 + $0x8] sm:$0xff] %vm49, %v1891
    // Predicated region
    $region54: #{tpu_custom_call.1} parent=1 // pred_check
      _
    $region55: #{tpu_custom_call.1} parent=1 // pred_check_branch
      %1895 = sbr.rel (0) target = $region57
    $region56: #{tpu_custom_call.1} parent=1 // pred_region
      %s1897 = ssub.s32 256, 256
      %1898 = vsyncadd [#allocation3], %s1897
      %s1899 = sshll.u32 [#allocation2], 4
      %s1900 = int_to_ptr.vmem [resolvable:$true] %s1899
      %1905 = dma.vmem_to_hbm [thread:$0]  %s1900, 256, %s13, [#allocation3], 128, 128, 8
    $region57: #{tpu_custom_call.1} parent=1 // pred_fallthru
      _
    // Predicated region
    $region58: #{tpu_custom_call.1} parent=1 // pred_check
      _
    $region59: #{tpu_custom_call.1} parent=1 // pred_check_branch
      %1907 = sbr.rel (0) target = $region61
    $region60: #{tpu_custom_call.1} parent=1 // pred_region
      %1908 = dma.done [#allocation3], 256
    $region61: #{tpu_custom_call.1} parent=1 // pred_fallthru
      _
    %1909 = vsyncpa [#allocation3], 1

</llo_original>
